<compile_context>
chip_gen: v7x
topology: tpu7x:2x2x1
jax: 0.10.0
libtpu: 0.0.40
codegen_flags: <defaults>
</compile_context>

<pallas_src>
import functools

import numpy as np
import jax
import jax.numpy as jnp
from jax import lax
from jax.experimental import pallas as pl
from jax.experimental.pallas import tpu as pltpu


def _round_up(x, m):
    return ((x + m - 1) // m) * m


def _vcreg_kernel(bi_ref, bj_ref, xi_ref, xj_ref, covsq_ref, std_ref, acc_ref,
                  *, n_attr, n_dims, gamma, tb):
    p = pl.program_id(0)
    k = pl.program_id(1)

    @pl.when(k == 0)
    def _():
        acc_ref[...] = jnp.zeros_like(acc_ref)

    # Gram block: contract the attribute (sublane) axis on the MXU: X_i^T @ X_j.
    acc_ref[...] += lax.dot_general(
        xi_ref[...], xj_ref[...],
        dimension_numbers=(((0,), (0,)), ((), ())),
        preferred_element_type=jnp.float32)

    @pl.when(k == pl.num_programs(1) - 1)
    def _():
        i_blk = bi_ref[p]
        j_blk = bj_ref[p]
        cov = acc_ref[...] * (1.0 / float(n_attr - 1))          # (tb, tb)

        row = lax.broadcasted_iota(jnp.int32, (tb, tb), 0) + i_blk * tb
        col = lax.broadcasted_iota(jnp.int32, (tb, tb), 1) + j_blk * tb
        is_diag = row == col                                     # all-False when i_blk != j_blk

        # Off-diagonal squared sum; off-diagonal block pairs stand in for their transpose.
        off = jnp.where(is_diag, 0.0, cov)
        factor = jnp.where(i_blk == j_blk, 1.0, 2.0)
        covsq_partial = jnp.sum(off * off) * factor

        # Variance hinge on real (unpadded) diagonal entries only.
        valid_diag = is_diag & (col < n_dims)
        hinge = jnp.maximum(gamma - jnp.sqrt(jnp.maximum(cov, 0.0) + 1e-4), 0.0)
        std_partial = jnp.sum(jnp.where(valid_diag, hinge, 0.0))

        r8 = lax.broadcasted_iota(jnp.int32, (8, 128), 0)
        c128 = lax.broadcasted_iota(jnp.int32, (8, 128), 1)
        at00 = (r8 == 0) & (c128 == 0)
        covsq_ref[...] = jnp.where(at00, covsq_partial, 0.0)
        std_ref[...] = jnp.where(at00, std_partial, 0.0)


def variance_covariance_reg_losses(embs, gamma=1.0):
    embs = jnp.asarray(embs, jnp.float32)
    n_attr, n_dims = embs.shape
    assert n_attr >= 2, "need at least 2 attribute rows for an unbiased variance"

    centered = embs - jnp.mean(embs, axis=0, keepdims=True)

    # Lane-pad the dim axis, sublane-pad the attribute axis (zero rows/cols are inert).
    d_pad = _round_up(n_dims, 128)
    tb = 256 if d_pad % 256 == 0 else 128
    n_pad0 = _round_up(n_attr, 8)
    tn = n_pad0 if n_pad0 <= 512 else 512
    n_pad = _round_up(n_pad0, tn)
    x = jnp.pad(centered, ((0, n_pad - n_attr), (0, d_pad - n_dims)))

    # Upper-triangular block-pair schedule (scalar-prefetched block-index tables).
    gi = d_pad // tb
    pairs = [(i, j) for i in range(gi) for j in range(i, gi)]
    n_pairs = len(pairs)
    bi = jnp.asarray(np.array([p[0] for p in pairs], np.int32))
    bj = jnp.asarray(np.array([p[1] for p in pairs], np.int32))

    kernel = functools.partial(_vcreg_kernel, n_attr=n_attr, n_dims=n_dims,
                               gamma=float(gamma), tb=tb)

    covsq_blocks, std_blocks = pl.pallas_call(
        kernel,
        grid_spec=pltpu.PrefetchScalarGridSpec(
            num_scalar_prefetch=2,
            grid=(n_pairs, n_pad // tn),
            in_specs=[
                pl.BlockSpec((tn, tb), lambda p, k, bi_r, bj_r: (k, bi_r[p])),
                pl.BlockSpec((tn, tb), lambda p, k, bi_r, bj_r: (k, bj_r[p])),
            ],
            out_specs=[
                pl.BlockSpec((8, 128), lambda p, k, bi_r, bj_r: (p, 0)),
                pl.BlockSpec((8, 128), lambda p, k, bi_r, bj_r: (p, 0)),
            ],
            scratch_shapes=[pltpu.VMEM((tb, tb), jnp.float32)],
        ),
        out_shape=(jax.ShapeDtypeStruct((n_pairs * 8, 128), jnp.float32),
                   jax.ShapeDtypeStruct((n_pairs * 8, 128), jnp.float32)),
        compiler_params=pltpu.CompilerParams(
            dimension_semantics=("parallel", "arbitrary")),
    )(bi, bj, x, x)

    std_loss = jnp.sum(std_blocks) / float(n_dims)
    cov_loss = jnp.sum(covsq_blocks) / float(n_dims)
    return std_loss, cov_loss


class VarianceCovarianceEmbeddingRegLossPallas:
    """JAX/Pallas equivalent of the torch VarianceCovarianceEmbeddingRegLoss module."""

    def __init__(self, name, loss_variance_weight, loss_covariance_weight, gamma=1):
        self.name = name
        self.loss_variance_weight = float(loss_variance_weight)
        self.loss_covariance_weight = float(loss_covariance_weight)
        self.gamma = float(gamma)

    def __call__(self, embeddings, lens=None):
        # torch: if the module has a 'weight' parameter (nn.Embedding), use it.
        embs = getattr(embeddings, "weight", embeddings)
        std_loss, cov_loss = variance_covariance_reg_losses(embs, self.gamma)
        return {
            "loss_{}_variance".format(self.name): (std_loss, self.loss_variance_weight),
            "loss_{}_covariance".format(self.name): (cov_loss, self.loss_covariance_weight),
        }


if __name__ == "__main__":
    key = jax.random.PRNGKey(0)
    n_attributes, n_dims = 16, 192          # pads to (16, 256): 2x2 cov blocks -> 3 block pairs
    embs = jax.random.normal(key, (n_attributes, n_dims), jnp.float32) * 0.5

    loss_mod = VarianceCovarianceEmbeddingRegLossPallas(
        name="speaker", loss_variance_weight=1.0, loss_covariance_weight=0.04, gamma=1.0)
    out = loss_mod(embs)

    vals = [v for (v, _) in out.values()]
    jax.block_until_ready(vals)

    # Pure-JAX reference mirroring the torch math.
    var = jnp.var(embs, axis=0, ddof=1)
    std_loss_ref = jnp.mean(jnp.maximum(1.0 - jnp.sqrt(var + 1e-4), 0.0))
    c = embs - jnp.mean(embs, axis=0, keepdims=True)
    cov = (c.T @ c) / (n_attributes - 1)
    off = cov * (1.0 - jnp.eye(n_dims, dtype=jnp.float32))
    cov_loss_ref = jnp.sum(off * off) / n_dims

    got = {k: np.asarray(v) for k, (v, _) in out.items()}
    assert all(np.all(np.isfinite(v)) for v in got.values())
    assert np.allclose(got["loss_speaker_variance"], np.asarray(std_loss_ref),
                       rtol=1e-4, atol=1e-6), (got["loss_speaker_variance"], std_loss_ref)
    assert np.allclose(got["loss_speaker_covariance"], np.asarray(cov_loss_ref),
                       rtol=1e-4, atol=1e-6), (got["loss_speaker_covariance"], cov_loss_ref)
    print("KERNEL_OK")
</pallas_src>

<mosaic_0001>
module attributes {stable_mosaic.version = 11 : i64} {
  func.func @_vcreg_kernel(%arg0: i32, %arg1: i32, %arg2: memref<1xi32, #tpu.memory_space<smem>>, %arg3: memref<1xi32, #tpu.memory_space<smem>>, %arg4: memref<16x256xf32, #tpu.memory_space<vmem>>, %arg5: memref<16x256xf32, #tpu.memory_space<vmem>>, %arg6: memref<8x128xf32, #tpu.memory_space<vmem>>, %arg7: memref<8x128xf32, #tpu.memory_space<vmem>>, %arg8: memref<256x256xf32, #tpu.memory_space<vmem>>) attributes {dimension_semantics = [#tpu.dimension_semantics<parallel>, #tpu.dimension_semantics<arbitrary>], iteration_bounds = array<i64: 1, 1>, scalar_prefetch = 2 : i64, scratch_operands = 1 : i64, tpu.core_type = #tpu.core_type<tc>, window_params = [{transform_indices = @transform_0, window_bounds = array<i64: 16, 256>}, {transform_indices = @transform_1, window_bounds = array<i64: 16, 256>}, {transform_indices = @transform_2, window_bounds = array<i64: 8, 128>}, {transform_indices = @transform_3, window_bounds = array<i64: 8, 128>}]} {
    %c0_i32 = arith.constant 0 : i32
    %0 = arith.cmpi eq, %arg1, %c0_i32 : i32
    %1 = arith.extui %0 : i1 to i32
    %c0_i32_0 = arith.constant 0 : i32
    %2 = arith.cmpi ne, %1, %c0_i32_0 : i32
    scf.if %2 {
      %cst_10 = arith.constant 0.000000e+00 : f32
      %12 = vector.broadcast %cst_10 : f32 to vector<256x256xf32>
      %c0_11 = arith.constant 0 : index
      %c0_12 = arith.constant 0 : index
      %13 = vector.load %arg8[%c0_11, %c0_12] : memref<256x256xf32, #tpu.memory_space<vmem>>, vector<256x256xf32>
      tpu.vector_store %arg8[%c0_11, %c0_12], %12 {strides = array<i32>} : memref<256x256xf32, #tpu.memory_space<vmem>>, vector<256x256xf32>,
    } else {
    }
    %c0 = arith.constant 0 : index
    %c0_1 = arith.constant 0 : index
    %3 = vector.load %arg8[%c0, %c0_1] : memref<256x256xf32, #tpu.memory_space<vmem>>, vector<256x256xf32>
    %c0_2 = arith.constant 0 : index
    %c0_3 = arith.constant 0 : index
    %4 = vector.load %arg4[%c0_2, %c0_3] : memref<16x256xf32, #tpu.memory_space<vmem>>, vector<16x256xf32>
    %c0_4 = arith.constant 0 : index
    %c0_5 = arith.constant 0 : index
    %5 = vector.load %arg5[%c0_4, %c0_5] : memref<16x256xf32, #tpu.memory_space<vmem>>, vector<16x256xf32>
    %cst = arith.constant dense<0.000000e+00> : vector<256x256xf32>
    %6 = tpu.matmul %4, %5, %cst {dimension_numbers = #tpu.dot_dimension_numbers<[0], [0], [1], [1], [0, 1, 1, 1], [], []>} : vector<16x256xf32>, vector<16x256xf32>, vector<256x256xf32> -> vector<256x256xf32>
    %7 = arith.addf %3, %6 : vector<256x256xf32>
    %c0_6 = arith.constant 0 : index
    %c0_7 = arith.constant 0 : index
    %8 = vector.load %arg8[%c0_6, %c0_7] : memref<256x256xf32, #tpu.memory_space<vmem>>, vector<256x256xf32>
    tpu.vector_store %arg8[%c0_6, %c0_7], %7 {strides = array<i32>} : memref<256x256xf32, #tpu.memory_space<vmem>>, vector<256x256xf32>,
    %c0_i32_8 = arith.constant 0 : i32
    %9 = arith.cmpi eq, %arg1, %c0_i32_8 : i32
    %10 = arith.extui %9 : i1 to i32
    %c0_i32_9 = arith.constant 0 : i32
    %11 = arith.cmpi ne, %10, %c0_i32_9 : i32
    scf.if %11 {
      %12 = arith.index_cast %arg0 : i32 to index
      %13 = memref.load %arg2[%12] : memref<1xi32, #tpu.memory_space<smem>>
      %14 = arith.index_cast %arg0 : i32 to index
      %15 = memref.load %arg3[%14] : memref<1xi32, #tpu.memory_space<smem>>
      %c0_10 = arith.constant 0 : index
      %c0_11 = arith.constant 0 : index
      %16 = vector.load %arg8[%c0_10, %c0_11] : memref<256x256xf32, #tpu.memory_space<vmem>>, vector<256x256xf32>
      %cst_12 = arith.constant 0.0666666701 : f32
      %17 = vector.broadcast %cst_12 : f32 to vector<256x256xf32>
      %18 = arith.mulf %16, %17 : vector<256x256xf32>
      %19 = tpu.iota {dimensions = array<i32: 0>} : vector<256x256xi32>
      %c256_i32 = arith.constant 256 : i32
      %20 = arith.muli %13, %c256_i32 : i32
      %21 = vector.broadcast %20 : i32 to vector<256x256xi32>
      %22 = arith.addi %19, %21 : vector<256x256xi32>
      %23 = tpu.iota {dimensions = array<i32: 1>} : vector<256x256xi32>
      %c256_i32_13 = arith.constant 256 : i32
      %24 = arith.muli %15, %c256_i32_13 : i32
      %25 = vector.broadcast %24 : i32 to vector<256x256xi32>
      %26 = arith.addi %23, %25 : vector<256x256xi32>
      %27 = arith.cmpi eq, %22, %26 : vector<256x256xi32>
      %cst_14 = arith.constant 0.000000e+00 : f32
      %28 = vector.broadcast %cst_14 : f32 to vector<256x256xf32>
      %29 = arith.select %27, %28, %18 : vector<256x256xi1>, vector<256x256xf32>
      %30 = arith.cmpi eq, %13, %15 : i32
      %cst_15 = arith.constant 1.000000e+00 : f32
      %cst_16 = arith.constant 2.000000e+00 : f32
      %31 = arith.select %30, %cst_15, %cst_16 : f32
      %32 = arith.mulf %29, %29 : vector<256x256xf32>
      %33 = vector.shape_cast %32 : vector<256x256xf32> to vector<1x256x256xf32>
      %cst_17 = arith.constant dense<0.000000e+00> : vector<1xf32>
      %34 = vector.multi_reduction <add>, %33, %cst_17 [1, 2] : vector<1x256x256xf32> to vector<1xf32>
      %35 = vector.shape_cast %34 : vector<1xf32> to vector<1x1x1xf32>
      %36 = vector.extract %35[0, 0, 0] : f32 from vector<1x1x1xf32>
      %37 = arith.mulf %36, %31 : f32
      %c192_i32 = arith.constant 192 : i32
      %38 = vector.broadcast %c192_i32 : i32 to vector<256x256xi32>
      %39 = arith.cmpi slt, %26, %38 : vector<256x256xi32>
      %40 = arith.andi %27, %39 : vector<256x256xi1>
      %cst_18 = arith.constant 0.000000e+00 : f32
      %41 = vector.broadcast %cst_18 : f32 to vector<256x256xf32>
      %42 = arith.maximumf %18, %41 : vector<256x256xf32>
      %cst_19 = arith.constant 9.99999974E-5 : f32
      %43 = vector.broadcast %cst_19 : f32 to vector<256x256xf32>
      %44 = arith.addf %42, %43 : vector<256x256xf32>
      %45 = math.sqrt %44 : vector<256x256xf32>
      %cst_20 = arith.constant 1.000000e+00 : f32
      %46 = vector.broadcast %cst_20 : f32 to vector<256x256xf32>
      %47 = arith.subf %46, %45 : vector<256x256xf32>
      %cst_21 = arith.constant 0.000000e+00 : f32
      %48 = vector.broadcast %cst_21 : f32 to vector<256x256xf32>
      %49 = arith.maximumf %47, %48 : vector<256x256xf32>
      %cst_22 = arith.constant 0.000000e+00 : f32
      %50 = vector.broadcast %cst_22 : f32 to vector<256x256xf32>
      %51 = arith.select %40, %49, %50 : vector<256x256xi1>, vector<256x256xf32>
      %52 = vector.shape_cast %51 : vector<256x256xf32> to vector<1x256x256xf32>
      %cst_23 = arith.constant dense<0.000000e+00> : vector<1xf32>
      %53 = vector.multi_reduction <add>, %52, %cst_23 [1, 2] : vector<1x256x256xf32> to vector<1xf32>
      %54 = vector.shape_cast %53 : vector<1xf32> to vector<1x1x1xf32>
      %55 = vector.extract %54[0, 0, 0] : f32 from vector<1x1x1xf32>
      %56 = tpu.iota {dimensions = array<i32: 0>} : vector<8x128xi32>
      %57 = tpu.iota {dimensions = array<i32: 1>} : vector<8x128xi32>
      %c0_i32_24 = arith.constant 0 : i32
      %58 = vector.broadcast %c0_i32_24 : i32 to vector<8x128xi32>
      %59 = arith.cmpi eq, %56, %58 : vector<8x128xi32>
      %c0_i32_25 = arith.constant 0 : i32
      %60 = vector.broadcast %c0_i32_25 : i32 to vector<8x128xi32>
      %61 = arith.cmpi eq, %57, %60 : vector<8x128xi32>
      %62 = arith.andi %59, %61 : vector<8x128xi1>
      %cst_26 = arith.constant 0.000000e+00 : f32
      %63 = vector.broadcast %37 : f32 to vector<8x128xf32>
      %64 = vector.broadcast %cst_26 : f32 to vector<8x128xf32>
      %65 = arith.select %62, %63, %64 : vector<8x128xi1>, vector<8x128xf32>
      %c0_27 = arith.constant 0 : index
      %c0_28 = arith.constant 0 : index
      %66 = vector.load %arg6[%c0_27, %c0_28] : memref<8x128xf32, #tpu.memory_space<vmem>>, vector<8x128xf32>
      tpu.vector_store %arg6[%c0_27, %c0_28], %65 {strides = array<i32>} : memref<8x128xf32, #tpu.memory_space<vmem>>, vector<8x128xf32>,
      %cst_29 = arith.constant 0.000000e+00 : f32
      %67 = vector.broadcast %55 : f32 to vector<8x128xf32>
      %68 = vector.broadcast %cst_29 : f32 to vector<8x128xf32>
      %69 = arith.select %62, %67, %68 : vector<8x128xi1>, vector<8x128xf32>
      %c0_30 = arith.constant 0 : index
      %c0_31 = arith.constant 0 : index
      %70 = vector.load %arg7[%c0_30, %c0_31] : memref<8x128xf32, #tpu.memory_space<vmem>>, vector<8x128xf32>
      tpu.vector_store %arg7[%c0_30, %c0_31], %69 {strides = array<i32>} : memref<8x128xf32, #tpu.memory_space<vmem>>, vector<8x128xf32>,
    } else {
    }
    return
  }
  func.func @transform_0(%arg0: i32, %arg1: i32, %arg2: memref<1xi32, #tpu.memory_space<smem>>, %arg3: memref<1xi32, #tpu.memory_space<smem>>) -> (i32, i32) {
    %0 = arith.index_cast %arg0 : i32 to index
    %1 = memref.load %arg2[%0] : memref<1xi32, #tpu.memory_space<smem>>
    %c0_i32 = arith.constant 0 : i32
    return %arg1, %1 : i32, i32
  }
  func.func @transform_1(%arg0: i32, %arg1: i32, %arg2: memref<1xi32, #tpu.memory_space<smem>>, %arg3: memref<1xi32, #tpu.memory_space<smem>>) -> (i32, i32) {
    %0 = arith.index_cast %arg0 : i32 to index
    %1 = memref.load %arg3[%0] : memref<1xi32, #tpu.memory_space<smem>>
    %c0_i32 = arith.constant 0 : i32
    return %arg1, %1 : i32, i32
  }
  func.func @transform_2(%arg0: i32, %arg1: i32, %arg2: memref<1xi32, #tpu.memory_space<smem>>, %arg3: memref<1xi32, #tpu.memory_space<smem>>) -> (i32, i32) {
    %c0_i32 = arith.constant 0 : i32
    %c0_i32_0 = arith.constant 0 : i32
    return %arg0, %c0_i32 : i32, i32
  }
  func.func @transform_3(%arg0: i32, %arg1: i32, %arg2: memref<1xi32, #tpu.memory_space<smem>>, %arg3: memref<1xi32, #tpu.memory_space<smem>>) -> (i32, i32) {
    %c0_i32 = arith.constant 0 : i32
    %c0_i32_0 = arith.constant 0 : i32
    return %arg0, %c0_i32 : i32, i32
  }
}

</mosaic_0001>

<llo_original>
// kernel: tpu_custom_call.1
$region0: #{tpu_custom_call.1}
  #allocation0 [shape = 'u32[]', space=smem, size = 0x4, offset = 0x4, fixed_abs, tag = 'smem constant byte address 0x4 - core index']
  #allocation1 [shape = 'u32[144,128]{1,0:T(1,128)}', space=vmem, size = 0x12000, scoped, tag = 'internal scratch']
  #allocation2 [shape = 'f32[256,256]{1,0:T(8,128)}', space=vmem, size = 0x40000, scoped, tag = 'scratch operand']
  #allocation3 [shape = 's32[1]{0}', space=sflag, size = 0x4, scoped, tag = 'scoped memory for tpu_custom_call.1']
  #allocation4 [shape = 's32[1]{0:T(128)S(6)}', space=smem, size = 0x200, scoped, tag = 'prefetched SMEM operand 0']
  #allocation5 [shape = 's32[1]{0:T(128)S(6)}', space=smem, size = 0x200, scoped, tag = 'prefetched SMEM operand 1']
  %s0 = inlined_call_operand.<no memory space> [shape: s32[1], index: 0, kind: input, shape index: {}]
  %s1 = inlined_call_operand.<no memory space> [shape: s32[1], index: 1, kind: input, shape index: {}]
  %s2 = inlined_call_operand.hbm [shape: f32[16,256], index: 2, kind: input, shape index: {}]
  %s3 = inlined_call_operand.hbm [shape: f32[16,256], index: 3, kind: input, shape index: {}]
  %s4 = inlined_call_operand.hbm [shape: f32[8,128], index: 4, kind: output, shape index: {0}]
  %s5 = inlined_call_operand.hbm [shape: f32[8,128], index: 5, kind: output, shape index: {1}]
  %6 = xla_tuple %s4, %s5
  %s7 = sld [smem:[#allocation0]]
  $region42: #{tpu_custom_call.1} parent=0
    _
  %s9 = ssub.s32 1, %s7
  %s10 = scalar_select 0, %s9, %s7
  %11 = sst [smem:[#allocation4]] %s0
  %12 = sst [smem:[#allocation5]] %s1
  $region1: #{tpu_custom_call.1} parent=0
    #allocation6 [shape = 'u8[16384]{0}', space=vmem, size = 0x4000, scoped, tag = 'input window, operand 2, single buffered']
    #allocation7 [shape = 's32[1]{0}', space=sflag, size = 0x4, scoped, tag = 'scoped memory for tpu_custom_call.1']
    #allocation8 [shape = 's32[1]{0}', space=sflag, size = 0x4, scoped, tag = 'scoped memory for tpu_custom_call.1']
    #allocation9 [shape = 'u8[16384]{0}', space=vmem, size = 0x4000, scoped, tag = 'input window, operand 3, single buffered']
    #allocation10 [shape = 's32[1]{0}', space=sflag, size = 0x4, scoped, tag = 'scoped memory for tpu_custom_call.1']
    #allocation11 [shape = 'u8[4096]{0}', space=vmem, size = 0x1000, scoped, tag = 'output window, operand 0, single buffered']
    #allocation12 [shape = 'u8[4096]{0}', space=vmem, size = 0x1000, scoped, tag = 'output window, operand 1, single buffered']
    #allocation13 [shape = 's32[1]{0}', space=sflag, size = 0x4, scoped, tag = 'scoped memory for tpu_custom_call.1']
    %13 = vsyncpa [#allocation7], 0
    %14 = vsyncpa [#allocation10], 0
    %15 = vsyncpa [#allocation8], 0
    %16 = vsyncpa [#allocation13], 0
    // Predicated region
    $region2: #{tpu_custom_call.1} parent=1 // pred_check
      _
    $region3: #{tpu_custom_call.1} parent=1 // pred_check_branch
      %18 = sbr.rel (0) target = $region5
    $region4: #{tpu_custom_call.1} parent=1 // pred_region
      %s19 = sld [smem:[#allocation4]]
      %s20 = smul.u32 2, %s19
      %s22 = ssub.s32 512, 512
      %23 = vsyncadd [#allocation7], %s22
      %s24 = smul.addr %s20, 128
      %s25 = scalar_lea.hbm %s2, %s24
      %s26 = sshll.u32 [#allocation6], 4
      %s27 = int_to_ptr.vmem [resolvable:$true] %s26
      %32 = dma.hbm_to_vmem [thread:$0]  %s25, 512, %s27, [#allocation7], 256, 256, 16
    $region5: #{tpu_custom_call.1} parent=1 // pred_fallthru
      _
    // Predicated region
    $region6: #{tpu_custom_call.1} parent=1 // pred_check
      _
    $region7: #{tpu_custom_call.1} parent=1 // pred_check_branch
      %34 = sbr.rel (0) target = $region9
    $region8: #{tpu_custom_call.1} parent=1 // pred_region
      %s35 = sld [smem:[#allocation5]]
      %s36 = smul.u32 2, %s35
      %s38 = ssub.s32 512, 512
      %39 = vsyncadd [#allocation10], %s38
      %s40 = smul.addr %s36, 128
      %s41 = scalar_lea.hbm %s3, %s40
      %s42 = sshll.u32 [#allocation9], 4
      %s43 = int_to_ptr.vmem [resolvable:$true] %s42
      %48 = dma.hbm_to_vmem [thread:$0]  %s41, 512, %s43, [#allocation10], 256, 256, 16
    $region9: #{tpu_custom_call.1} parent=1 // pred_fallthru
      _
    // Predicated region
    $region10: #{tpu_custom_call.1} parent=1 // pred_check
      _
    $region11: #{tpu_custom_call.1} parent=1 // pred_check_branch
      %50 = sbr.rel (0) target = $region13
    $region12: #{tpu_custom_call.1} parent=1 // pred_region
      %51 = dma.done [#allocation7], 512
    $region13: #{tpu_custom_call.1} parent=1 // pred_fallthru
      _
    // Predicated region
    $region14: #{tpu_custom_call.1} parent=1 // pred_check
      _
    $region15: #{tpu_custom_call.1} parent=1 // pred_check_branch
      %53 = sbr.rel (0) target = $region17
    $region16: #{tpu_custom_call.1} parent=1 // pred_region
      %54 = dma.done [#allocation10], 512
    $region17: #{tpu_custom_call.1} parent=1 // pred_fallthru
      _
    %s55 = sld [smem:[#allocation4]]
    %s56 = smul.u32 2, %s55
    %s57 = sld [smem:[#allocation5]]
    %s58 = smul.u32 2, %s57
    %p59 = scmp.eq.s32.totalorder 0, 0
    // Predicated region
    $region18: #{tpu_custom_call.1} parent=1 // pred_check
      %p60 = pneg %p59
    $region19: #{tpu_custom_call.1} parent=1 // pred_check_branch
      %62 = sbr.rel (%p60) target = $region21
    $region20: #{tpu_custom_call.1} parent=1 // pred_region
      %63 = vst [vmem:[#allocation2] sm:$0xff] 0.0
      %64 = vst [vmem:[#allocation2 + $0x8] sm:$0xff] 0.0
      %65 = vst [vmem:[#allocation2 + $0x10] sm:$0xff] 0.0
      %66 = vst [vmem:[#allocation2 + $0x18] sm:$0xff] 0.0
      %67 = vst [vmem:[#allocation2 + $0x20] sm:$0xff] 0.0
      %68 = vst [vmem:[#allocation2 + $0x28] sm:$0xff] 0.0
      %69 = vst [vmem:[#allocation2 + $0x30] sm:$0xff] 0.0
      %70 = vst [vmem:[#allocation2 + $0x38] sm:$0xff] 0.0
      %71 = vst [vmem:[#allocation2 + $0x40] sm:$0xff] 0.0
      %72 = vst [vmem:[#allocation2 + $0x48] sm:$0xff] 0.0
      %73 = vst [vmem:[#allocation2 + $0x50] sm:$0xff] 0.0
      %74 = vst [vmem:[#allocation2 + $0x58] sm:$0xff] 0.0
      %75 = vst [vmem:[#allocation2 + $0x60] sm:$0xff] 0.0
      %76 = vst [vmem:[#allocation2 + $0x68] sm:$0xff] 0.0
      %77 = vst [vmem:[#allocation2 + $0x70] sm:$0xff] 0.0
      %78 = vst [vmem:[#allocation2 + $0x78] sm:$0xff] 0.0
      %79 = vst [vmem:[#allocation2 + $0x80] sm:$0xff] 0.0
      %80 = vst [vmem:[#allocation2 + $0x88] sm:$0xff] 0.0
      %81 = vst [vmem:[#allocation2 + $0x90] sm:$0xff] 0.0
      %82 = vst [vmem:[#allocation2 + $0x98] sm:$0xff] 0.0
      %83 = vst [vmem:[#allocation2 + $0xa0] sm:$0xff] 0.0
      %84 = vst [vmem:[#allocation2 + $0xa8] sm:$0xff] 0.0
      %85 = vst [vmem:[#allocation2 + $0xb0] sm:$0xff] 0.0
      %86 = vst [vmem:[#allocation2 + $0xb8] sm:$0xff] 0.0
      %87 = vst [vmem:[#allocation2 + $0xc0] sm:$0xff] 0.0
      %88 = vst [vmem:[#allocation2 + $0xc8] sm:$0xff] 0.0
      %89 = vst [vmem:[#allocation2 + $0xd0] sm:$0xff] 0.0
      %90 = vst [vmem:[#allocation2 + $0xd8] sm:$0xff] 0.0
      %91 = vst [vmem:[#allocation2 + $0xe0] sm:$0xff] 0.0
      %92 = vst [vmem:[#allocation2 + $0xe8] sm:$0xff] 0.0
      %93 = vst [vmem:[#allocation2 + $0xf0] sm:$0xff] 0.0
      %94 = vst [vmem:[#allocation2 + $0xf8] sm:$0xff] 0.0
      %95 = vst [vmem:[#allocation2 + $0x100] sm:$0xff] 0.0
      %96 = vst [vmem:[#allocation2 + $0x108] sm:$0xff] 0.0
      %97 = vst [vmem:[#allocation2 + $0x110] sm:$0xff] 0.0
      %98 = vst [vmem:[#allocation2 + $0x118] sm:$0xff] 0.0
      %99 = vst [vmem:[#allocation2 + $0x120] sm:$0xff] 0.0
      %100 = vst [vmem:[#allocation2 + $0x128] sm:$0xff] 0.0
      %101 = vst [vmem:[#allocation2 + $0x130] sm:$0xff] 0.0
      %102 = vst [vmem:[#allocation2 + $0x138] sm:$0xff] 0.0
      %103 = vst [vmem:[#allocation2 + $0x140] sm:$0xff] 0.0
      %104 = vst [vmem:[#allocation2 + $0x148] sm:$0xff] 0.0
      %105 = vst [vmem:[#allocation2 + $0x150] sm:$0xff] 0.0
      %106 = vst [vmem:[#allocation2 + $0x158] sm:$0xff] 0.0
      %107 = vst [vmem:[#allocation2 + $0x160] sm:$0xff] 0.0
      %108 = vst [vmem:[#allocation2 + $0x168] sm:$0xff] 0.0
      %109 = vst [vmem:[#allocation2 + $0x170] sm:$0xff] 0.0
      %110 = vst [vmem:[#allocation2 + $0x178] sm:$0xff] 0.0
      %111 = vst [vmem:[#allocation2 + $0x180] sm:$0xff] 0.0
      %112 = vst [vmem:[#allocation2 + $0x188] sm:$0xff] 0.0
      %113 = vst [vmem:[#allocation2 + $0x190] sm:$0xff] 0.0
      %114 = vst [vmem:[#allocation2 + $0x198] sm:$0xff] 0.0
      %115 = vst [vmem:[#allocation2 + $0x1a0] sm:$0xff] 0.0
      %116 = vst [vmem:[#allocation2 + $0x1a8] sm:$0xff] 0.0
      %117 = vst [vmem:[#allocation2 + $0x1b0] sm:$0xff] 0.0
      %118 = vst [vmem:[#allocation2 + $0x1b8] sm:$0xff] 0.0
      %119 = vst [vmem:[#allocation2 + $0x1c0] sm:$0xff] 0.0
      %120 = vst [vmem:[#allocation2 + $0x1c8] sm:$0xff] 0.0
      %121 = vst [vmem:[#allocation2 + $0x1d0] sm:$0xff] 0.0
      %122 = vst [vmem:[#allocation2 + $0x1d8] sm:$0xff] 0.0
      %123 = vst [vmem:[#allocation2 + $0x1e0] sm:$0xff] 0.0
      %124 = vst [vmem:[#allocation2 + $0x1e8] sm:$0xff] 0.0
      %125 = vst [vmem:[#allocation2 + $0x1f0] sm:$0xff] 0.0
      %126 = vst [vmem:[#allocation2 + $0x1f8] sm:$0xff] 0.0
    $region21: #{tpu_custom_call.1} parent=1 // pred_fallthru
      _
    %v127 = vld [vmem:[#allocation2] sm:$0xff]
    %v128 = vld [vmem:[#allocation2 + $0x8] sm:$0xff]
    %v129 = vld [vmem:[#allocation2 + $0x10] sm:$0xff]
    %v130 = vld [vmem:[#allocation2 + $0x18] sm:$0xff]
    %v131 = vld [vmem:[#allocation2 + $0x20] sm:$0xff]
    %v132 = vld [vmem:[#allocation2 + $0x28] sm:$0xff]
    %v133 = vld [vmem:[#allocation2 + $0x30] sm:$0xff]
    %v134 = vld [vmem:[#allocation2 + $0x38] sm:$0xff]
    %v135 = vld [vmem:[#allocation2 + $0x40] sm:$0xff]
    %v136 = vld [vmem:[#allocation2 + $0x48] sm:$0xff]
    %v137 = vld [vmem:[#allocation2 + $0x50] sm:$0xff]
    %v138 = vld [vmem:[#allocation2 + $0x58] sm:$0xff]
    %v139 = vld [vmem:[#allocation2 + $0x60] sm:$0xff]
    %v140 = vld [vmem:[#allocation2 + $0x68] sm:$0xff]
    %v141 = vld [vmem:[#allocation2 + $0x70] sm:$0xff]
    %v142 = vld [vmem:[#allocation2 + $0x78] sm:$0xff]
    %v143 = vld [vmem:[#allocation2 + $0x80] sm:$0xff]
    %v144 = vld [vmem:[#allocation2 + $0x88] sm:$0xff]
    %v145 = vld [vmem:[#allocation2 + $0x90] sm:$0xff]
    %v146 = vld [vmem:[#allocation2 + $0x98] sm:$0xff]
    %v147 = vld [vmem:[#allocation2 + $0xa0] sm:$0xff]
    %v148 = vld [vmem:[#allocation2 + $0xa8] sm:$0xff]
    %v149 = vld [vmem:[#allocation2 + $0xb0] sm:$0xff]
    %v150 = vld [vmem:[#allocation2 + $0xb8] sm:$0xff]
    %v151 = vld [vmem:[#allocation2 + $0xc0] sm:$0xff]
    %v152 = vld [vmem:[#allocation2 + $0xc8] sm:$0xff]
    %v153 = vld [vmem:[#allocation2 + $0xd0] sm:$0xff]
    %v154 = vld [vmem:[#allocation2 + $0xd8] sm:$0xff]
    %v155 = vld [vmem:[#allocation2 + $0xe0] sm:$0xff]
    %v156 = vld [vmem:[#allocation2 + $0xe8] sm:$0xff]
    %v157 = vld [vmem:[#allocation2 + $0xf0] sm:$0xff]
    %v158 = vld [vmem:[#allocation2 + $0xf8] sm:$0xff]
    %v159 = vld [vmem:[#allocation2 + $0x100] sm:$0xff]
    %v160 = vld [vmem:[#allocation2 + $0x108] sm:$0xff]
    %v161 = vld [vmem:[#allocation2 + $0x110] sm:$0xff]
    %v162 = vld [vmem:[#allocation2 + $0x118] sm:$0xff]
    %v163 = vld [vmem:[#allocation2 + $0x120] sm:$0xff]
    %v164 = vld [vmem:[#allocation2 + $0x128] sm:$0xff]
    %v165 = vld [vmem:[#allocation2 + $0x130] sm:$0xff]
    %v166 = vld [vmem:[#allocation2 + $0x138] sm:$0xff]
    %v167 = vld [vmem:[#allocation2 + $0x140] sm:$0xff]
    %v168 = vld [vmem:[#allocation2 + $0x148] sm:$0xff]
    %v169 = vld [vmem:[#allocation2 + $0x150] sm:$0xff]
    %v170 = vld [vmem:[#allocation2 + $0x158] sm:$0xff]
    %v171 = vld [vmem:[#allocation2 + $0x160] sm:$0xff]
    %v172 = vld [vmem:[#allocation2 + $0x168] sm:$0xff]
    %v173 = vld [vmem:[#allocation2 + $0x170] sm:$0xff]
    %v174 = vld [vmem:[#allocation2 + $0x178] sm:$0xff]
    %v175 = vld [vmem:[#allocation2 + $0x180] sm:$0xff]
    %v176 = vld [vmem:[#allocation2 + $0x188] sm:$0xff]
    %v177 = vld [vmem:[#allocation2 + $0x190] sm:$0xff]
    %v178 = vld [vmem:[#allocation2 + $0x198] sm:$0xff]
    %v179 = vld [vmem:[#allocation2 + $0x1a0] sm:$0xff]
    %v180 = vld [vmem:[#allocation2 + $0x1a8] sm:$0xff]
    %v181 = vld [vmem:[#allocation2 + $0x1b0] sm:$0xff]
    %v182 = vld [vmem:[#allocation2 + $0x1b8] sm:$0xff]
    %v183 = vld [vmem:[#allocation2 + $0x1c0] sm:$0xff]
    %v184 = vld [vmem:[#allocation2 + $0x1c8] sm:$0xff]
    %v185 = vld [vmem:[#allocation2 + $0x1d0] sm:$0xff]
    %v186 = vld [vmem:[#allocation2 + $0x1d8] sm:$0xff]
    %v187 = vld [vmem:[#allocation2 + $0x1e0] sm:$0xff]
    %v188 = vld [vmem:[#allocation2 + $0x1e8] sm:$0xff]
    %v189 = vld [vmem:[#allocation2 + $0x1f0] sm:$0xff]
    %v190 = vld [vmem:[#allocation2 + $0x1f8] sm:$0xff]
    %v191 = vld [vmem:[#allocation6] sm:$0xff]
    %v192 = vld [vmem:[#allocation6 + $0x8] sm:$0xff]
    %v193 = vld [vmem:[#allocation6 + $0x10] sm:$0xff]
    %v194 = vld [vmem:[#allocation6 + $0x18] sm:$0xff]
    %v195 = vld [vmem:[#allocation9] sm:$0xff]
    %v196 = vld [vmem:[#allocation9 + $0x8] sm:$0xff]
    %v197 = vld [vmem:[#allocation9 + $0x10] sm:$0xff]
    %v198 = vld [vmem:[#allocation9 + $0x18] sm:$0xff]
    %199 = vxpose.xlu0.b32.start [1/16] %v191, 128
    %200 = vxpose.xlu0.b32.cont [2/16] %v193, 128
    %201 = vxpose.xlu0.b32.cont [3/16] 0.0, 128
    %202 = vxpose.xlu0.b32.cont [4/16] 0.0, 128
    %203 = vxpose.xlu0.b32.cont [5/16] 0.0, 128
    %204 = vxpose.xlu0.b32.cont [6/16] 0.0, 128
    %205 = vxpose.xlu0.b32.cont [7/16] 0.0, 128
    %206 = vxpose.xlu0.b32.cont [8/16] 0.0, 128
    %207 = vxpose.xlu0.b32.cont [9/16] 0.0, 128
    %208 = vxpose.xlu0.b32.cont [10/16] 0.0, 128
    %209 = vxpose.xlu0.b32.cont [11/16] 0.0, 128
    %210 = vxpose.xlu0.b32.cont [12/16] 0.0, 128
    %211 = vxpose.xlu0.b32.cont [13/16] 0.0, 128
    %212 = vxpose.xlu0.b32.cont [14/16] 0.0, 128
    %213 = vxpose.xlu0.b32.cont [15/16] 0.0, 128
    %214 = vxpose.xlu0.b32.end [16/16] 0.0, 128
    %v215 = vpop.trf.xlu0
    %v216 = vpop.trf.xlu0
    %v217 = vpop.trf.xlu0
    %v218 = vpop.trf.xlu0
    %v219 = vpop.trf.xlu0
    %v220 = vpop.trf.xlu0
    %v221 = vpop.trf.xlu0
    %v222 = vpop.trf.xlu0
    %v223 = vpop.trf.xlu0
    %v224 = vpop.trf.xlu0
    %v225 = vpop.trf.xlu0
    %v226 = vpop.trf.xlu0
    %v227 = vpop.trf.xlu0
    %v228 = vpop.trf.xlu0
    %v229 = vpop.trf.xlu0
    %v230 = vpop.trf.xlu0
    %231 = vxpose.xlu0.b32.start [1/16] %v192, 128
    %232 = vxpose.xlu0.b32.cont [2/16] %v194, 128
    %233 = vxpose.xlu0.b32.cont [3/16] 0.0, 128
    %234 = vxpose.xlu0.b32.cont [4/16] 0.0, 128
    %235 = vxpose.xlu0.b32.cont [5/16] 0.0, 128
    %236 = vxpose.xlu0.b32.cont [6/16] 0.0, 128
    %237 = vxpose.xlu0.b32.cont [7/16] 0.0, 128
    %238 = vxpose.xlu0.b32.cont [8/16] 0.0, 128
    %239 = vxpose.xlu0.b32.cont [9/16] 0.0, 128
    %240 = vxpose.xlu0.b32.cont [10/16] 0.0, 128
    %241 = vxpose.xlu0.b32.cont [11/16] 0.0, 128
    %242 = vxpose.xlu0.b32.cont [12/16] 0.0, 128
    %243 = vxpose.xlu0.b32.cont [13/16] 0.0, 128
    %244 = vxpose.xlu0.b32.cont [14/16] 0.0, 128
    %245 = vxpose.xlu0.b32.cont [15/16] 0.0, 128
    %246 = vxpose.xlu0.b32.end [16/16] 0.0, 128
    %v247 = vpop.trf.xlu0
    %v248 = vpop.trf.xlu0
    %v249 = vpop.trf.xlu0
    %v250 = vpop.trf.xlu0
    %v251 = vpop.trf.xlu0
    %v252 = vpop.trf.xlu0
    %v253 = vpop.trf.xlu0
    %v254 = vpop.trf.xlu0
    %v255 = vpop.trf.xlu0
    %v256 = vpop.trf.xlu0
    %v257 = vpop.trf.xlu0
    %v258 = vpop.trf.xlu0
    %v259 = vpop.trf.xlu0
    %v260 = vpop.trf.xlu0
    %v261 = vpop.trf.xlu0
    %v262 = vpop.trf.xlu0
    %vm263 = vcmask 130048
    %v265 = vsel %vm263, %v215, 0
    %v268 = vsel %vm263, %v216, 0
    %v271 = vsel %vm263, %v217, 0
    %v274 = vsel %vm263, %v218, 0
    %v277 = vsel %vm263, %v219, 0
    %v280 = vsel %vm263, %v220, 0
    %v283 = vsel %vm263, %v221, 0
    %v286 = vsel %vm263, %v222, 0
    %v289 = vsel %vm263, %v223, 0
    %v292 = vsel %vm263, %v224, 0
    %v295 = vsel %vm263, %v225, 0
    %v298 = vsel %vm263, %v226, 0
    %v301 = vsel %vm263, %v227, 0
    %v304 = vsel %vm263, %v228, 0
    %v307 = vsel %vm263, %v229, 0
    %v310 = vsel %vm263, %v230, 0
    %v313 = vsel %vm263, %v247, 0
    %v316 = vsel %vm263, %v248, 0
    %v319 = vsel %vm263, %v249, 0
    %v322 = vsel %vm263, %v250, 0
    %v325 = vsel %vm263, %v251, 0
    %v328 = vsel %vm263, %v252, 0
    %v331 = vsel %vm263, %v253, 0
    %v334 = vsel %vm263, %v254, 0
    %v337 = vsel %vm263, %v255, 0
    %v340 = vsel %vm263, %v256, 0
    %v343 = vsel %vm263, %v257, 0
    %v346 = vsel %vm263, %v258, 0
    %v349 = vsel %vm263, %v259, 0
    %v352 = vsel %vm263, %v260, 0
    %v355 = vsel %vm263, %v261, 0
    %v358 = vsel %vm263, %v262, 0
    %360 = vmatprep.subr.mxu0 %v196
    %361 = vmatpush1.msra.mxu0 %v195
    %362 = vmatprep.subr.mxu0 %v198
    %363 = vmatpush1.msra.mxu0 %v197
    %364 = vmatprep.subr.mxu0 0.0
    %365 = vmatpush1.msra.mxu0 0.0
    %366 = vmatprep.subr.mxu0 0.0
    %367 = vmatpush1.msra.mxu0 0.0
    %368 = vmatprep.subr.mxu0 0.0
    %369 = vmatpush1.msra.mxu0 0.0
    %370 = vmatprep.subr.mxu0 0.0
    %371 = vmatpush1.msra.mxu0 0.0
    %372 = vmatprep.subr.mxu0 0.0
    %373 = vmatpush1.msra.mxu0 0.0
    %374 = vmatprep.subr.mxu0 0.0
    %375 = vmatpush1.msra.mxu0 0.0
    %376 = vmatprep.subr.mxu0 0.0
    %377 = vmatpush1.msra.mxu0 0.0
    %378 = vmatprep.subr.mxu0 0.0
    %379 = vmatpush1.msra.mxu0 0.0
    %380 = vmatprep.subr.mxu0 0.0
    %381 = vmatpush1.msra.mxu0 0.0
    %382 = vmatprep.subr.mxu0 0.0
    %383 = vmatpush1.msra.mxu0 0.0
    %384 = vmatprep.subr.mxu0 0.0
    %385 = vmatpush1.msra.mxu0 0.0
    %386 = vmatprep.subr.mxu0 0.0
    %387 = vmatpush1.msra.mxu0 0.0
    %388 = vmatprep.subr.mxu0 0.0
    %389 = vmatpush1.msra.mxu0 0.0
    %390 = vmatprep.subr.mxu0 0.0
    %391 = vmatpush1.msra.mxu0 0.0
    %392 = vmatprep.subr.mxu0 0.0
    %393 = vmatpush1.msra.mxu0 0.0
    %394 = vmatprep.subr.mxu0 0.0
    %395 = vmatpush1.msra.mxu0 0.0
    %396 = vmatprep.subr.mxu0 0.0
    %397 = vmatpush1.msra.mxu0 0.0
    %398 = vmatprep.subr.mxu0 0.0
    %399 = vmatpush1.msra.mxu0 0.0
    %400 = vmatprep.subr.mxu0 0.0
    %401 = vmatpush1.msra.mxu0 0.0
    %402 = vmatprep.subr.mxu0 0.0
    %403 = vmatpush1.msra.mxu0 0.0
    %404 = vmatprep.subr.mxu0 0.0
    %405 = vmatpush1.msra.mxu0 0.0
    %406 = vmatprep.subr.mxu0 0.0
    %407 = vmatpush1.msra.mxu0 0.0
    %408 = vmatprep.subr.mxu0 0.0
    %409 = vmatpush1.msra.mxu0 0.0
    %410 = vmatprep.subr.mxu0 0.0
    %411 = vmatpush1.msra.mxu0 0.0
    %412 = vmatprep.subr.mxu0 0.0
    %413 = vmatpush1.msra.mxu0 0.0
    %414 = vmatprep.subr.mxu0 0.0
    %415 = vmatpush1.msra.mxu0 0.0
    %416 = vmatprep.subr.mxu0 0.0
    %417 = vmatpush1.msra.mxu0 0.0
    %418 = vmatprep.subr.mxu0 0.0
    %419 = vmatpush1.msra.mxu0 0.0
    %420 = vmatprep.subr.mxu0 0.0
    %421 = vmatpush1.msra.mxu0 0.0
    %422 = vmatprep.subr.mxu0 0.0
    %423 = vmatpush1.msra.mxu0 0.0
    %424 = vmatprep.mubr.f32.mxu0 0.0
    %425 = vmatmul.mubr.f32.gmra.mrb[0].mxu0 %v265
    %v426 = vpop.f32.mrb[0].mxu0
    %v427 = vadd.f32 0.0, %v426
    %v428 = vpop.f32.mrb[0].mxu0
    %v429 = vadd.f32 0.0, %v428
    %430 = vmatprep.mubr.f32.mxu0 0.0
    %431 = vmatmul.mubr.f32.gmra.mrb[0].mxu0 %v268
    %v432 = vpop.f32.mrb[0].mxu0
    %v433 = vadd.f32 0.0, %v432
    %v434 = vpop.f32.mrb[0].mxu0
    %v435 = vadd.f32 0.0, %v434
    %436 = vmatprep.mubr.f32.mxu0 0.0
    %437 = vmatmul.mubr.f32.gmra.mrb[0].mxu0 %v271
    %v438 = vpop.f32.mrb[0].mxu0
    %v439 = vadd.f32 0.0, %v438
    %v440 = vpop.f32.mrb[0].mxu0
    %v441 = vadd.f32 0.0, %v440
    %442 = vmatprep.mubr.f32.mxu0 0.0
    %443 = vmatmul.mubr.f32.gmra.mrb[0].mxu0 %v274
    %v444 = vpop.f32.mrb[0].mxu0
    %v445 = vadd.f32 0.0, %v444
    %v446 = vpop.f32.mrb[0].mxu0
    %v447 = vadd.f32 0.0, %v446
    %448 = vmatprep.mubr.f32.mxu0 0.0
    %449 = vmatmul.mubr.f32.gmra.mrb[0].mxu0 %v277
    %v450 = vpop.f32.mrb[0].mxu0
    %v451 = vadd.f32 0.0, %v450
    %v452 = vpop.f32.mrb[0].mxu0
    %v453 = vadd.f32 0.0, %v452
    %454 = vmatprep.mubr.f32.mxu0 0.0
    %455 = vmatmul.mubr.f32.gmra.mrb[0].mxu0 %v280
    %v456 = vpop.f32.mrb[0].mxu0
    %v457 = vadd.f32 0.0, %v456
    %v458 = vpop.f32.mrb[0].mxu0
    %v459 = vadd.f32 0.0, %v458
    %460 = vmatprep.mubr.f32.mxu0 0.0
    %461 = vmatmul.mubr.f32.gmra.mrb[0].mxu0 %v283
    %v462 = vpop.f32.mrb[0].mxu0
    %v463 = vadd.f32 0.0, %v462
    %v464 = vpop.f32.mrb[0].mxu0
    %v465 = vadd.f32 0.0, %v464
    %466 = vmatprep.mubr.f32.mxu0 0.0
    %467 = vmatmul.mubr.f32.gmra.mrb[0].mxu0 %v286
    %v468 = vpop.f32.mrb[0].mxu0
    %v469 = vadd.f32 0.0, %v468
    %v470 = vpop.f32.mrb[0].mxu0
    %v471 = vadd.f32 0.0, %v470
    %472 = vmatprep.mubr.f32.mxu0 0.0
    %473 = vmatmul.mubr.f32.gmra.mrb[0].mxu0 %v289
    %v474 = vpop.f32.mrb[0].mxu0
    %v475 = vadd.f32 0.0, %v474
    %v476 = vpop.f32.mrb[0].mxu0
    %v477 = vadd.f32 0.0, %v476
    %478 = vmatprep.mubr.f32.mxu0 0.0
    %479 = vmatmul.mubr.f32.gmra.mrb[0].mxu0 %v292
    %v480 = vpop.f32.mrb[0].mxu0
    %v481 = vadd.f32 0.0, %v480
    %v482 = vpop.f32.mrb[0].mxu0
    %v483 = vadd.f32 0.0, %v482
    %484 = vmatprep.mubr.f32.mxu0 0.0
    %485 = vmatmul.mubr.f32.gmra.mrb[0].mxu0 %v295
    %v486 = vpop.f32.mrb[0].mxu0
    %v487 = vadd.f32 0.0, %v486
    %v488 = vpop.f32.mrb[0].mxu0
    %v489 = vadd.f32 0.0, %v488
    %490 = vmatprep.mubr.f32.mxu0 0.0
    %491 = vmatmul.mubr.f32.gmra.mrb[0].mxu0 %v298
    %v492 = vpop.f32.mrb[0].mxu0
    %v493 = vadd.f32 0.0, %v492
    %v494 = vpop.f32.mrb[0].mxu0
    %v495 = vadd.f32 0.0, %v494
    %496 = vmatprep.mubr.f32.mxu0 0.0
    %497 = vmatmul.mubr.f32.gmra.mrb[0].mxu0 %v301
    %v498 = vpop.f32.mrb[0].mxu0
    %v499 = vadd.f32 0.0, %v498
    %v500 = vpop.f32.mrb[0].mxu0
    %v501 = vadd.f32 0.0, %v500
    %502 = vmatprep.mubr.f32.mxu0 0.0
    %503 = vmatmul.mubr.f32.gmra.mrb[0].mxu0 %v304
    %v504 = vpop.f32.mrb[0].mxu0
    %v505 = vadd.f32 0.0, %v504
    %v506 = vpop.f32.mrb[0].mxu0
    %v507 = vadd.f32 0.0, %v506
    %508 = vmatprep.mubr.f32.mxu0 0.0
    %509 = vmatmul.mubr.f32.gmra.mrb[0].mxu0 %v307
    %v510 = vpop.f32.mrb[0].mxu0
    %v511 = vadd.f32 0.0, %v510
    %v512 = vpop.f32.mrb[0].mxu0
    %v513 = vadd.f32 0.0, %v512
    %514 = vmatprep.mubr.f32.mxu0 0.0
    %515 = vmatmul.mubr.f32.gmra.mrb[0].mxu0 %v310
    %v516 = vpop.f32.mrb[0].mxu0
    %v517 = vadd.f32 0.0, %v516
    %v518 = vpop.f32.mrb[0].mxu0
    %v519 = vadd.f32 0.0, %v518
    %520 = vmatprep.mubr.f32.mxu0 0.0
    %521 = vmatmul.mubr.f32.gmra.mrb[0].mxu0 %v313
    %v522 = vpop.f32.mrb[0].mxu0
    %v523 = vadd.f32 0.0, %v522
    %v524 = vpop.f32.mrb[0].mxu0
    %v525 = vadd.f32 0.0, %v524
    %526 = vmatprep.mubr.f32.mxu0 0.0
    %527 = vmatmul.mubr.f32.gmra.mrb[0].mxu0 %v316
    %v528 = vpop.f32.mrb[0].mxu0
    %v529 = vadd.f32 0.0, %v528
    %v530 = vpop.f32.mrb[0].mxu0
    %v531 = vadd.f32 0.0, %v530
    %532 = vmatprep.mubr.f32.mxu0 0.0
    %533 = vmatmul.mubr.f32.gmra.mrb[0].mxu0 %v319
    %v534 = vpop.f32.mrb[0].mxu0
    %v535 = vadd.f32 0.0, %v534
    %v536 = vpop.f32.mrb[0].mxu0
    %v537 = vadd.f32 0.0, %v536
    %538 = vmatprep.mubr.f32.mxu0 0.0
    %539 = vmatmul.mubr.f32.gmra.mrb[0].mxu0 %v322
    %v540 = vpop.f32.mrb[0].mxu0
    %v541 = vadd.f32 0.0, %v540
    %v542 = vpop.f32.mrb[0].mxu0
    %v543 = vadd.f32 0.0, %v542
    %544 = vmatprep.mubr.f32.mxu0 0.0
    %545 = vmatmul.mubr.f32.gmra.mrb[0].mxu0 %v325
    %v546 = vpop.f32.mrb[0].mxu0
    %v547 = vadd.f32 0.0, %v546
    %v548 = vpop.f32.mrb[0].mxu0
    %v549 = vadd.f32 0.0, %v548
    %550 = vmatprep.mubr.f32.mxu0 0.0
    %551 = vmatmul.mubr.f32.gmra.mrb[0].mxu0 %v328
    %v552 = vpop.f32.mrb[0].mxu0
    %v553 = vadd.f32 0.0, %v552
    %v554 = vpop.f32.mrb[0].mxu0
    %v555 = vadd.f32 0.0, %v554
    %556 = vmatprep.mubr.f32.mxu0 0.0
    %557 = vmatmul.mubr.f32.gmra.mrb[0].mxu0 %v331
    %v558 = vpop.f32.mrb[0].mxu0
    %v559 = vadd.f32 0.0, %v558
    %v560 = vpop.f32.mrb[0].mxu0
    %v561 = vadd.f32 0.0, %v560
    %562 = vmatprep.mubr.f32.mxu0 0.0
    %563 = vmatmul.mubr.f32.gmra.mrb[0].mxu0 %v334
    %v564 = vpop.f32.mrb[0].mxu0
    %v565 = vadd.f32 0.0, %v564
    %v566 = vpop.f32.mrb[0].mxu0
    %v567 = vadd.f32 0.0, %v566
    %568 = vmatprep.mubr.f32.mxu0 0.0
    %569 = vmatmul.mubr.f32.gmra.mrb[0].mxu0 %v337
    %v570 = vpop.f32.mrb[0].mxu0
    %v571 = vadd.f32 0.0, %v570
    %v572 = vpop.f32.mrb[0].mxu0
    %v573 = vadd.f32 0.0, %v572
    %574 = vmatprep.mubr.f32.mxu0 0.0
    %575 = vmatmul.mubr.f32.gmra.mrb[0].mxu0 %v340
    %v576 = vpop.f32.mrb[0].mxu0
    %v577 = vadd.f32 0.0, %v576
    %v578 = vpop.f32.mrb[0].mxu0
    %v579 = vadd.f32 0.0, %v578
    %580 = vmatprep.mubr.f32.mxu0 0.0
    %581 = vmatmul.mubr.f32.gmra.mrb[0].mxu0 %v343
    %v582 = vpop.f32.mrb[0].mxu0
    %v583 = vadd.f32 0.0, %v582
    %v584 = vpop.f32.mrb[0].mxu0
    %v585 = vadd.f32 0.0, %v584
    %586 = vmatprep.mubr.f32.mxu0 0.0
    %587 = vmatmul.mubr.f32.gmra.mrb[0].mxu0 %v346
    %v588 = vpop.f32.mrb[0].mxu0
    %v589 = vadd.f32 0.0, %v588
    %v590 = vpop.f32.mrb[0].mxu0
    %v591 = vadd.f32 0.0, %v590
    %592 = vmatprep.mubr.f32.mxu0 0.0
    %593 = vmatmul.mubr.f32.gmra.mrb[0].mxu0 %v349
    %v594 = vpop.f32.mrb[0].mxu0
    %v595 = vadd.f32 0.0, %v594
    %v596 = vpop.f32.mrb[0].mxu0
    %v597 = vadd.f32 0.0, %v596
    %598 = vmatprep.mubr.f32.mxu0 0.0
    %599 = vmatmul.mubr.f32.gmra.mrb[0].mxu0 %v352
    %v600 = vpop.f32.mrb[0].mxu0
    %v601 = vadd.f32 0.0, %v600
    %v602 = vpop.f32.mrb[0].mxu0
    %v603 = vadd.f32 0.0, %v602
    %604 = vmatprep.mubr.f32.mxu0 0.0
    %605 = vmatmul.mubr.f32.gmra.mrb[0].mxu0 %v355
    %v606 = vpop.f32.mrb[0].mxu0
    %v607 = vadd.f32 0.0, %v606
    %v608 = vpop.f32.mrb[0].mxu0
    %v609 = vadd.f32 0.0, %v608
    %610 = vmatprep.mubr.f32.mxu0 0.0
    %611 = vmatmul.mubr.f32.gmra.mrb[0].mxu0 %v358
    %v612 = vpop.f32.mrb[0].mxu0
    %v613 = vadd.f32 0.0, %v612
    %v614 = vpop.f32.mrb[0].mxu0
    %v615 = vadd.f32 0.0, %v614
    %616 = vdwg.mxu0
    %v617 = vadd.f32 %v127, %v427
    %v618 = vadd.f32 %v128, %v429
    %v619 = vadd.f32 %v129, %v433
    %v620 = vadd.f32 %v130, %v435
    %v621 = vadd.f32 %v131, %v439
    %v622 = vadd.f32 %v132, %v441
    %v623 = vadd.f32 %v133, %v445
    %v624 = vadd.f32 %v134, %v447
    %v625 = vadd.f32 %v135, %v451
    %v626 = vadd.f32 %v136, %v453
    %v627 = vadd.f32 %v137, %v457
    %v628 = vadd.f32 %v138, %v459
    %v629 = vadd.f32 %v139, %v463
    %v630 = vadd.f32 %v140, %v465
    %v631 = vadd.f32 %v141, %v469
    %v632 = vadd.f32 %v142, %v471
    %v633 = vadd.f32 %v143, %v475
    %v634 = vadd.f32 %v144, %v477
    %v635 = vadd.f32 %v145, %v481
    %v636 = vadd.f32 %v146, %v483
    %v637 = vadd.f32 %v147, %v487
    %v638 = vadd.f32 %v148, %v489
    %v639 = vadd.f32 %v149, %v493
    %v640 = vadd.f32 %v150, %v495
    %v641 = vadd.f32 %v151, %v499
    %v642 = vadd.f32 %v152, %v501
    %v643 = vadd.f32 %v153, %v505
    %v644 = vadd.f32 %v154, %v507
    %v645 = vadd.f32 %v155, %v511
    %v646 = vadd.f32 %v156, %v513
    %v647 = vadd.f32 %v157, %v517
    %v648 = vadd.f32 %v158, %v519
    %v649 = vadd.f32 %v159, %v523
    %v650 = vadd.f32 %v160, %v525
    %v651 = vadd.f32 %v161, %v529
    %v652 = vadd.f32 %v162, %v531
    %v653 = vadd.f32 %v163, %v535
    %v654 = vadd.f32 %v164, %v537
    %v655 = vadd.f32 %v165, %v541
    %v656 = vadd.f32 %v166, %v543
    %v657 = vadd.f32 %v167, %v547
    %v658 = vadd.f32 %v168, %v549
    %v659 = vadd.f32 %v169, %v553
    %v660 = vadd.f32 %v170, %v555
    %v661 = vadd.f32 %v171, %v559
    %v662 = vadd.f32 %v172, %v561
    %v663 = vadd.f32 %v173, %v565
    %v664 = vadd.f32 %v174, %v567
    %v665 = vadd.f32 %v175, %v571
    %v666 = vadd.f32 %v176, %v573
    %v667 = vadd.f32 %v177, %v577
    %v668 = vadd.f32 %v178, %v579
    %v669 = vadd.f32 %v179, %v583
    %v670 = vadd.f32 %v180, %v585
    %v671 = vadd.f32 %v181, %v589
    %v672 = vadd.f32 %v182, %v591
    %v673 = vadd.f32 %v183, %v595
    %v674 = vadd.f32 %v184, %v597
    %v675 = vadd.f32 %v185, %v601
    %v676 = vadd.f32 %v186, %v603
    %v677 = vadd.f32 %v187, %v607
    %v678 = vadd.f32 %v188, %v609
    %v679 = vadd.f32 %v189, %v613
    %v680 = vadd.f32 %v190, %v615
    %681 = vst [vmem:[#allocation2] sm:$0xff] %v617
    %682 = vst [vmem:[#allocation2 + $0x8] sm:$0xff] %v618
    %683 = vst [vmem:[#allocation2 + $0x10] sm:$0xff] %v619
    %684 = vst [vmem:[#allocation2 + $0x18] sm:$0xff] %v620
    %685 = vst [vmem:[#allocation2 + $0x20] sm:$0xff] %v621
    %686 = vst [vmem:[#allocation2 + $0x28] sm:$0xff] %v622
    %687 = vst [vmem:[#allocation2 + $0x30] sm:$0xff] %v623
    %688 = vst [vmem:[#allocation2 + $0x38] sm:$0xff] %v624
    %689 = vst [vmem:[#allocation2 + $0x40] sm:$0xff] %v625
    %690 = vst [vmem:[#allocation2 + $0x48] sm:$0xff] %v626
    %691 = vst [vmem:[#allocation2 + $0x50] sm:$0xff] %v627
    %692 = vst [vmem:[#allocation2 + $0x58] sm:$0xff] %v628
    %693 = vst [vmem:[#allocation2 + $0x60] sm:$0xff] %v629
    %694 = vst [vmem:[#allocation2 + $0x68] sm:$0xff] %v630
    %695 = vst [vmem:[#allocation2 + $0x70] sm:$0xff] %v631
    %696 = vst [vmem:[#allocation2 + $0x78] sm:$0xff] %v632
    %697 = vst [vmem:[#allocation2 + $0x80] sm:$0xff] %v633
    %698 = vst [vmem:[#allocation2 + $0x88] sm:$0xff] %v634
    %699 = vst [vmem:[#allocation2 + $0x90] sm:$0xff] %v635
    %700 = vst [vmem:[#allocation2 + $0x98] sm:$0xff] %v636
    %701 = vst [vmem:[#allocation2 + $0xa0] sm:$0xff] %v637
    %702 = vst [vmem:[#allocation2 + $0xa8] sm:$0xff] %v638
    %703 = vst [vmem:[#allocation2 + $0xb0] sm:$0xff] %v639
    %704 = vst [vmem:[#allocation2 + $0xb8] sm:$0xff] %v640
    %705 = vst [vmem:[#allocation2 + $0xc0] sm:$0xff] %v641
    %706 = vst [vmem:[#allocation2 + $0xc8] sm:$0xff] %v642
    %707 = vst [vmem:[#allocation2 + $0xd0] sm:$0xff] %v643
    %708 = vst [vmem:[#allocation2 + $0xd8] sm:$0xff] %v644
    %709 = vst [vmem:[#allocation2 + $0xe0] sm:$0xff] %v645
    %710 = vst [vmem:[#allocation2 + $0xe8] sm:$0xff] %v646
    %711 = vst [vmem:[#allocation2 + $0xf0] sm:$0xff] %v647
    %712 = vst [vmem:[#allocation2 + $0xf8] sm:$0xff] %v648
    %713 = vst [vmem:[#allocation2 + $0x100] sm:$0xff] %v649
    %714 = vst [vmem:[#allocation2 + $0x108] sm:$0xff] %v650
    %715 = vst [vmem:[#allocation2 + $0x110] sm:$0xff] %v651
    %716 = vst [vmem:[#allocation2 + $0x118] sm:$0xff] %v652
    %717 = vst [vmem:[#allocation2 + $0x120] sm:$0xff] %v653
    %718 = vst [vmem:[#allocation2 + $0x128] sm:$0xff] %v654
    %719 = vst [vmem:[#allocation2 + $0x130] sm:$0xff] %v655
    %720 = vst [vmem:[#allocation2 + $0x138] sm:$0xff] %v656
    %721 = vst [vmem:[#allocation2 + $0x140] sm:$0xff] %v657
    %722 = vst [vmem:[#allocation2 + $0x148] sm:$0xff] %v658
    %723 = vst [vmem:[#allocation2 + $0x150] sm:$0xff] %v659
    %724 = vst [vmem:[#allocation2 + $0x158] sm:$0xff] %v660
    %725 = vst [vmem:[#allocation2 + $0x160] sm:$0xff] %v661
    %726 = vst [vmem:[#allocation2 + $0x168] sm:$0xff] %v662
    %727 = vst [vmem:[#allocation2 + $0x170] sm:$0xff] %v663
    %728 = vst [vmem:[#allocation2 + $0x178] sm:$0xff] %v664
    %729 = vst [vmem:[#allocation2 + $0x180] sm:$0xff] %v665
    %730 = vst [vmem:[#allocation2 + $0x188] sm:$0xff] %v666
    %731 = vst [vmem:[#allocation2 + $0x190] sm:$0xff] %v667
    %732 = vst [vmem:[#allocation2 + $0x198] sm:$0xff] %v668
    %733 = vst [vmem:[#allocation2 + $0x1a0] sm:$0xff] %v669
    %734 = vst [vmem:[#allocation2 + $0x1a8] sm:$0xff] %v670
    %735 = vst [vmem:[#allocation2 + $0x1b0] sm:$0xff] %v671
    %736 = vst [vmem:[#allocation2 + $0x1b8] sm:$0xff] %v672
    %737 = vst [vmem:[#allocation2 + $0x1c0] sm:$0xff] %v673
    %738 = vst [vmem:[#allocation2 + $0x1c8] sm:$0xff] %v674
    %739 = vst [vmem:[#allocation2 + $0x1d0] sm:$0xff] %v675
    %740 = vst [vmem:[#allocation2 + $0x1d8] sm:$0xff] %v676
    %741 = vst [vmem:[#allocation2 + $0x1e0] sm:$0xff] %v677
    %742 = vst [vmem:[#allocation2 + $0x1e8] sm:$0xff] %v678
    %743 = vst [vmem:[#allocation2 + $0x1f0] sm:$0xff] %v679
    %744 = vst [vmem:[#allocation2 + $0x1f8] sm:$0xff] %v680
    // Predicated region
    $region22: #{tpu_custom_call.1} parent=1 // pred_check
      %p745 = pneg %p59
    $region23: #{tpu_custom_call.1} parent=1 // pred_check_branch
      %747 = sbr.rel (%p745) target = $region25
    $region24: #{tpu_custom_call.1} parent=1 // pred_region
      %s748 = sld [smem:[#allocation4]]
      %s749 = sld [smem:[#allocation5]]
      %v750 = vld [vmem:[#allocation2] sm:$0xff]
      %v751 = vld [vmem:[#allocation2 + $0x8] sm:$0xff]
      %v752 = vld [vmem:[#allocation2 + $0x10] sm:$0xff]
      %v753 = vld [vmem:[#allocation2 + $0x18] sm:$0xff]
      %v754 = vld [vmem:[#allocation2 + $0x20] sm:$0xff]
      %v755 = vld [vmem:[#allocation2 + $0x28] sm:$0xff]
      %v756 = vld [vmem:[#allocation2 + $0x30] sm:$0xff]
      %v757 = vld [vmem:[#allocation2 + $0x38] sm:$0xff]
      %v758 = vld [vmem:[#allocation2 + $0x40] sm:$0xff]
      %v759 = vld [vmem:[#allocation2 + $0x48] sm:$0xff]
      %v760 = vld [vmem:[#allocation2 + $0x50] sm:$0xff]
      %v761 = vld [vmem:[#allocation2 + $0x58] sm:$0xff]
      %v762 = vld [vmem:[#allocation2 + $0x60] sm:$0xff]
      %v763 = vld [vmem:[#allocation2 + $0x68] sm:$0xff]
      %v764 = vld [vmem:[#allocation2 + $0x70] sm:$0xff]
      %v765 = vld [vmem:[#allocation2 + $0x78] sm:$0xff]
      %v766 = vld [vmem:[#allocation2 + $0x80] sm:$0xff]
      %v767 = vld [vmem:[#allocation2 + $0x88] sm:$0xff]
      %v768 = vld [vmem:[#allocation2 + $0x90] sm:$0xff]
      %v769 = vld [vmem:[#allocation2 + $0x98] sm:$0xff]
      %v770 = vld [vmem:[#allocation2 + $0xa0] sm:$0xff]
      %v771 = vld [vmem:[#allocation2 + $0xa8] sm:$0xff]
      %v772 = vld [vmem:[#allocation2 + $0xb0] sm:$0xff]
      %v773 = vld [vmem:[#allocation2 + $0xb8] sm:$0xff]
      %v774 = vld [vmem:[#allocation2 + $0xc0] sm:$0xff]
      %v775 = vld [vmem:[#allocation2 + $0xc8] sm:$0xff]
      %v776 = vld [vmem:[#allocation2 + $0xd0] sm:$0xff]
      %v777 = vld [vmem:[#allocation2 + $0xd8] sm:$0xff]
      %v778 = vld [vmem:[#allocation2 + $0xe0] sm:$0xff]
      %v779 = vld [vmem:[#allocation2 + $0xe8] sm:$0xff]
      %v780 = vld [vmem:[#allocation2 + $0xf0] sm:$0xff]
      %v781 = vld [vmem:[#allocation2 + $0xf8] sm:$0xff]
      %v782 = vld [vmem:[#allocation2 + $0x100] sm:$0xff]
      %v783 = vld [vmem:[#allocation2 + $0x108] sm:$0xff]
      %v784 = vld [vmem:[#allocation2 + $0x110] sm:$0xff]
      %v785 = vld [vmem:[#allocation2 + $0x118] sm:$0xff]
      %v786 = vld [vmem:[#allocation2 + $0x120] sm:$0xff]
      %v787 = vld [vmem:[#allocation2 + $0x128] sm:$0xff]
      %v788 = vld [vmem:[#allocation2 + $0x130] sm:$0xff]
      %v789 = vld [vmem:[#allocation2 + $0x138] sm:$0xff]
      %v790 = vld [vmem:[#allocation2 + $0x140] sm:$0xff]
      %v791 = vld [vmem:[#allocation2 + $0x148] sm:$0xff]
      %v792 = vld [vmem:[#allocation2 + $0x150] sm:$0xff]
      %v793 = vld [vmem:[#allocation2 + $0x158] sm:$0xff]
      %v794 = vld [vmem:[#allocation2 + $0x160] sm:$0xff]
      %v795 = vld [vmem:[#allocation2 + $0x168] sm:$0xff]
      %v796 = vld [vmem:[#allocation2 + $0x170] sm:$0xff]
      %v797 = vld [vmem:[#allocation2 + $0x178] sm:$0xff]
      %v798 = vld [vmem:[#allocation2 + $0x180] sm:$0xff]
      %v799 = vld [vmem:[#allocation2 + $0x188] sm:$0xff]
      %v800 = vld [vmem:[#allocation2 + $0x190] sm:$0xff]
      %v801 = vld [vmem:[#allocation2 + $0x198] sm:$0xff]
      %v802 = vld [vmem:[#allocation2 + $0x1a0] sm:$0xff]
      %v803 = vld [vmem:[#allocation2 + $0x1a8] sm:$0xff]
      %v804 = vld [vmem:[#allocation2 + $0x1b0] sm:$0xff]
      %v805 = vld [vmem:[#allocation2 + $0x1b8] sm:$0xff]
      %v806 = vld [vmem:[#allocation2 + $0x1c0] sm:$0xff]
      %v807 = vld [vmem:[#allocation2 + $0x1c8] sm:$0xff]
      %v808 = vld [vmem:[#allocation2 + $0x1d0] sm:$0xff]
      %v809 = vld [vmem:[#allocation2 + $0x1d8] sm:$0xff]
      %v810 = vld [vmem:[#allocation2 + $0x1e0] sm:$0xff]
      %v811 = vld [vmem:[#allocation2 + $0x1e8] sm:$0xff]
      %v812 = vld [vmem:[#allocation2 + $0x1f0] sm:$0xff]
      %v813 = vld [vmem:[#allocation2 + $0x1f8] sm:$0xff]
      %v814 = vmul.f32 %v750, 0.06666667
      %v815 = vmul.f32 %v751, 0.06666667
      %v816 = vmul.f32 %v752, 0.06666667
      %v817 = vmul.f32 %v753, 0.06666667
      %v818 = vmul.f32 %v754, 0.06666667
      %v819 = vmul.f32 %v755, 0.06666667
      %v820 = vmul.f32 %v756, 0.06666667
      %v821 = vmul.f32 %v757, 0.06666667
      %v822 = vmul.f32 %v758, 0.06666667
      %v823 = vmul.f32 %v759, 0.06666667
      %v824 = vmul.f32 %v760, 0.06666667
      %v825 = vmul.f32 %v761, 0.06666667
      %v826 = vmul.f32 %v762, 0.06666667
      %v827 = vmul.f32 %v763, 0.06666667
      %v828 = vmul.f32 %v764, 0.06666667
      %v829 = vmul.f32 %v765, 0.06666667
      %v830 = vmul.f32 %v766, 0.06666667
      %v831 = vmul.f32 %v767, 0.06666667
      %v832 = vmul.f32 %v768, 0.06666667
      %v833 = vmul.f32 %v769, 0.06666667
      %v834 = vmul.f32 %v770, 0.06666667
      %v835 = vmul.f32 %v771, 0.06666667
      %v836 = vmul.f32 %v772, 0.06666667
      %v837 = vmul.f32 %v773, 0.06666667
      %v838 = vmul.f32 %v774, 0.06666667
      %v839 = vmul.f32 %v775, 0.06666667
      %v840 = vmul.f32 %v776, 0.06666667
      %v841 = vmul.f32 %v777, 0.06666667
      %v842 = vmul.f32 %v778, 0.06666667
      %v843 = vmul.f32 %v779, 0.06666667
      %v844 = vmul.f32 %v780, 0.06666667
      %v845 = vmul.f32 %v781, 0.06666667
      %v846 = vmul.f32 %v782, 0.06666667
      %v847 = vmul.f32 %v783, 0.06666667
      %v848 = vmul.f32 %v784, 0.06666667
      %v849 = vmul.f32 %v785, 0.06666667
      %v850 = vmul.f32 %v786, 0.06666667
      %v851 = vmul.f32 %v787, 0.06666667
      %v852 = vmul.f32 %v788, 0.06666667
      %v853 = vmul.f32 %v789, 0.06666667
      %v854 = vmul.f32 %v790, 0.06666667
      %v855 = vmul.f32 %v791, 0.06666667
      %v856 = vmul.f32 %v792, 0.06666667
      %v857 = vmul.f32 %v793, 0.06666667
      %v858 = vmul.f32 %v794, 0.06666667
      %v859 = vmul.f32 %v795, 0.06666667
      %v860 = vmul.f32 %v796, 0.06666667
      %v861 = vmul.f32 %v797, 0.06666667
      %v862 = vmul.f32 %v798, 0.06666667
      %v863 = vmul.f32 %v799, 0.06666667
      %v864 = vmul.f32 %v800, 0.06666667
      %v865 = vmul.f32 %v801, 0.06666667
      %v866 = vmul.f32 %v802, 0.06666667
      %v867 = vmul.f32 %v803, 0.06666667
      %v868 = vmul.f32 %v804, 0.06666667
      %v869 = vmul.f32 %v805, 0.06666667
      %v870 = vmul.f32 %v806, 0.06666667
      %v871 = vmul.f32 %v807, 0.06666667
      %v872 = vmul.f32 %v808, 0.06666667
      %v873 = vmul.f32 %v809, 0.06666667
      %v874 = vmul.f32 %v810, 0.06666667
      %v875 = vmul.f32 %v811, 0.06666667
      %v876 = vmul.f32 %v812, 0.06666667
      %v877 = vmul.f32 %v813, 0.06666667
      %v878 = vlaneseq
      %v879 = vshrl.u32 %v878, 7
      %v880 = vadd.s32 %v879, 8
      %v881 = vadd.s32 %v879, 16
      %v882 = vadd.s32 %v879, 24
      %v883 = vadd.s32 %v879, 32
      %v884 = vadd.s32 %v879, 40
      %v885 = vadd.s32 %v879, 48
      %v886 = vadd.s32 %v879, 56
      %v887 = vadd.s32 %v879, 64
      %v888 = vadd.s32 %v879, 72
      %v889 = vadd.s32 %v879, 80
      %v890 = vadd.s32 %v879, 88
      %v891 = vadd.s32 %v879, 96
      %v892 = vadd.s32 %v879, 104
      %v893 = vadd.s32 %v879, 112
      %v894 = vadd.s32 %v879, 120
      %v895 = vadd.s32 %v879, 128
      %v896 = vadd.s32 %v879, 136
      %v897 = vadd.s32 %v879, 144
      %v898 = vadd.s32 %v879, 152
      %v899 = vadd.s32 %v879, 160
      %v900 = vadd.s32 %v879, 168
      %v901 = vadd.s32 %v879, 176
      %v902 = vadd.s32 %v879, 184
      %v903 = vadd.s32 %v879, 192
      %v904 = vadd.s32 %v879, 200
      %v905 = vadd.s32 %v879, 208
      %v906 = vadd.s32 %v879, 216
      %v907 = vadd.s32 %v879, 224
      %v908 = vadd.s32 %v879, 232
      %v909 = vadd.s32 %v879, 240
      %v910 = vadd.s32 %v879, 248
      %s911 = smul.u32 %s748, 256
      %v912 = vstv %s911
      %v913 = vadd.s32 %v879, %v912
      %v914 = vadd.s32 %v880, %v912
      %v915 = vadd.s32 %v881, %v912
      %v916 = vadd.s32 %v882, %v912
      %v917 = vadd.s32 %v883, %v912
      %v918 = vadd.s32 %v884, %v912
      %v919 = vadd.s32 %v885, %v912
      %v920 = vadd.s32 %v886, %v912
      %v921 = vadd.s32 %v887, %v912
      %v922 = vadd.s32 %v888, %v912
      %v923 = vadd.s32 %v889, %v912
      %v924 = vadd.s32 %v890, %v912
      %v925 = vadd.s32 %v891, %v912
      %v926 = vadd.s32 %v892, %v912
      %v927 = vadd.s32 %v893, %v912
      %v928 = vadd.s32 %v894, %v912
      %v929 = vadd.s32 %v895, %v912
      %v930 = vadd.s32 %v896, %v912
      %v931 = vadd.s32 %v897, %v912
      %v932 = vadd.s32 %v898, %v912
      %v933 = vadd.s32 %v899, %v912
      %v934 = vadd.s32 %v900, %v912
      %v935 = vadd.s32 %v901, %v912
      %v936 = vadd.s32 %v902, %v912
      %v937 = vadd.s32 %v903, %v912
      %v938 = vadd.s32 %v904, %v912
      %v939 = vadd.s32 %v905, %v912
      %v940 = vadd.s32 %v906, %v912
      %v941 = vadd.s32 %v907, %v912
      %v942 = vadd.s32 %v908, %v912
      %v943 = vadd.s32 %v909, %v912
      %v944 = vadd.s32 %v910, %v912
      %v945 = vlaneseq
      %v946 = vand.u32 %v945, 127
      %v947 = vadd.s32 %v946, 128
      %s948 = smul.u32 %s749, 256
      %v949 = vstv %s948
      %v950 = vadd.s32 %v946, %v949
      %v951 = vadd.s32 %v947, %v949
      %vm952 = vcmp.eq.s32.totalorder %v913, %v950
      %vm953 = vcmp.eq.s32.totalorder %v913, %v951
      %vm954 = vcmp.eq.s32.totalorder %v914, %v950
      %vm955 = vcmp.eq.s32.totalorder %v914, %v951
      %vm956 = vcmp.eq.s32.totalorder %v915, %v950
      %vm957 = vcmp.eq.s32.totalorder %v915, %v951
      %vm958 = vcmp.eq.s32.totalorder %v916, %v950
      %vm959 = vcmp.eq.s32.totalorder %v916, %v951
      %vm960 = vcmp.eq.s32.totalorder %v917, %v950
      %vm961 = vcmp.eq.s32.totalorder %v917, %v951
      %vm962 = vcmp.eq.s32.totalorder %v918, %v950
      %vm963 = vcmp.eq.s32.totalorder %v918, %v951
      %vm964 = vcmp.eq.s32.totalorder %v919, %v950
      %vm965 = vcmp.eq.s32.totalorder %v919, %v951
      %vm966 = vcmp.eq.s32.totalorder %v920, %v950
      %vm967 = vcmp.eq.s32.totalorder %v920, %v951
      %vm968 = vcmp.eq.s32.totalorder %v921, %v950
      %vm969 = vcmp.eq.s32.totalorder %v921, %v951
      %vm970 = vcmp.eq.s32.totalorder %v922, %v950
      %vm971 = vcmp.eq.s32.totalorder %v922, %v951
      %vm972 = vcmp.eq.s32.totalorder %v923, %v950
      %vm973 = vcmp.eq.s32.totalorder %v923, %v951
      %vm974 = vcmp.eq.s32.totalorder %v924, %v950
      %vm975 = vcmp.eq.s32.totalorder %v924, %v951
      %vm976 = vcmp.eq.s32.totalorder %v925, %v950
      %vm977 = vcmp.eq.s32.totalorder %v925, %v951
      %vm978 = vcmp.eq.s32.totalorder %v926, %v950
      %vm979 = vcmp.eq.s32.totalorder %v926, %v951
      %vm980 = vcmp.eq.s32.totalorder %v927, %v950
      %vm981 = vcmp.eq.s32.totalorder %v927, %v951
      %vm982 = vcmp.eq.s32.totalorder %v928, %v950
      %vm983 = vcmp.eq.s32.totalorder %v928, %v951
      %vm984 = vcmp.eq.s32.totalorder %v929, %v950
      %vm985 = vcmp.eq.s32.totalorder %v929, %v951
      %vm986 = vcmp.eq.s32.totalorder %v930, %v950
      %vm987 = vcmp.eq.s32.totalorder %v930, %v951
      %vm988 = vcmp.eq.s32.totalorder %v931, %v950
      %vm989 = vcmp.eq.s32.totalorder %v931, %v951
      %vm990 = vcmp.eq.s32.totalorder %v932, %v950
      %vm991 = vcmp.eq.s32.totalorder %v932, %v951
      %vm992 = vcmp.eq.s32.totalorder %v933, %v950
      %vm993 = vcmp.eq.s32.totalorder %v933, %v951
      %vm994 = vcmp.eq.s32.totalorder %v934, %v950
      %vm995 = vcmp.eq.s32.totalorder %v934, %v951
      %vm996 = vcmp.eq.s32.totalorder %v935, %v950
      %vm997 = vcmp.eq.s32.totalorder %v935, %v951
      %vm998 = vcmp.eq.s32.totalorder %v936, %v950
      %vm999 = vcmp.eq.s32.totalorder %v936, %v951
      %vm1000 = vcmp.eq.s32.totalorder %v937, %v950
      %vm1001 = vcmp.eq.s32.totalorder %v937, %v951
      %vm1002 = vcmp.eq.s32.totalorder %v938, %v950
      %vm1003 = vcmp.eq.s32.totalorder %v938, %v951
      %vm1004 = vcmp.eq.s32.totalorder %v939, %v950
      %vm1005 = vcmp.eq.s32.totalorder %v939, %v951
      %vm1006 = vcmp.eq.s32.totalorder %v940, %v950
      %vm1007 = vcmp.eq.s32.totalorder %v940, %v951
      %vm1008 = vcmp.eq.s32.totalorder %v941, %v950
      %vm1009 = vcmp.eq.s32.totalorder %v941, %v951
      %vm1010 = vcmp.eq.s32.totalorder %v942, %v950
      %vm1011 = vcmp.eq.s32.totalorder %v942, %v951
      %vm1012 = vcmp.eq.s32.totalorder %v943, %v950
      %vm1013 = vcmp.eq.s32.totalorder %v943, %v951
      %vm1014 = vcmp.eq.s32.totalorder %v944, %v950
      %vm1015 = vcmp.eq.s32.totalorder %v944, %v951
      %v1016 = vsel %vm952, 0.0, %v814
      %v1017 = vsel %vm953, 0.0, %v815
      %v1018 = vsel %vm954, 0.0, %v816
      %v1019 = vsel %vm955, 0.0, %v817
      %v1020 = vsel %vm956, 0.0, %v818
      %v1021 = vsel %vm957, 0.0, %v819
      %v1022 = vsel %vm958, 0.0, %v820
      %v1023 = vsel %vm959, 0.0, %v821
      %v1024 = vsel %vm960, 0.0, %v822
      %v1025 = vsel %vm961, 0.0, %v823
      %v1026 = vsel %vm962, 0.0, %v824
      %v1027 = vsel %vm963, 0.0, %v825
      %v1028 = vsel %vm964, 0.0, %v826
      %v1029 = vsel %vm965, 0.0, %v827
      %v1030 = vsel %vm966, 0.0, %v828
      %v1031 = vsel %vm967, 0.0, %v829
      %v1032 = vsel %vm968, 0.0, %v830
      %v1033 = vsel %vm969, 0.0, %v831
      %v1034 = vsel %vm970, 0.0, %v832
      %v1035 = vsel %vm971, 0.0, %v833
      %v1036 = vsel %vm972, 0.0, %v834
      %v1037 = vsel %vm973, 0.0, %v835
      %v1038 = vsel %vm974, 0.0, %v836
      %v1039 = vsel %vm975, 0.0, %v837
      %v1040 = vsel %vm976, 0.0, %v838
      %v1041 = vsel %vm977, 0.0, %v839
      %v1042 = vsel %vm978, 0.0, %v840
      %v1043 = vsel %vm979, 0.0, %v841
      %v1044 = vsel %vm980, 0.0, %v842
      %v1045 = vsel %vm981, 0.0, %v843
      %v1046 = vsel %vm982, 0.0, %v844
      %v1047 = vsel %vm983, 0.0, %v845
      %v1048 = vsel %vm984, 0.0, %v846
      %v1049 = vsel %vm985, 0.0, %v847
      %v1050 = vsel %vm986, 0.0, %v848
      %v1051 = vsel %vm987, 0.0, %v849
      %v1052 = vsel %vm988, 0.0, %v850
      %v1053 = vsel %vm989, 0.0, %v851
      %v1054 = vsel %vm990, 0.0, %v852
      %v1055 = vsel %vm991, 0.0, %v853
      %v1056 = vsel %vm992, 0.0, %v854
      %v1057 = vsel %vm993, 0.0, %v855
      %v1058 = vsel %vm994, 0.0, %v856
      %v1059 = vsel %vm995, 0.0, %v857
      %v1060 = vsel %vm996, 0.0, %v858
      %v1061 = vsel %vm997, 0.0, %v859
      %v1062 = vsel %vm998, 0.0, %v860
      %v1063 = vsel %vm999, 0.0, %v861
      %v1064 = vsel %vm1000, 0.0, %v862
      %v1065 = vsel %vm1001, 0.0, %v863
      %v1066 = vsel %vm1002, 0.0, %v864
      %v1067 = vsel %vm1003, 0.0, %v865
      %v1068 = vsel %vm1004, 0.0, %v866
      %v1069 = vsel %vm1005, 0.0, %v867
      %v1070 = vsel %vm1006, 0.0, %v868
      %v1071 = vsel %vm1007, 0.0, %v869
      %v1072 = vsel %vm1008, 0.0, %v870
      %v1073 = vsel %vm1009, 0.0, %v871
      %v1074 = vsel %vm1010, 0.0, %v872
      %v1075 = vsel %vm1011, 0.0, %v873
      %v1076 = vsel %vm1012, 0.0, %v874
      %v1077 = vsel %vm1013, 0.0, %v875
      %v1078 = vsel %vm1014, 0.0, %v876
      %v1079 = vsel %vm1015, 0.0, %v877
      %p1080 = scmp.eq.s32.totalorder %s748, %s749
      %s1081 = scalar_select %p1080, 1.0, 2.0
      %v1082 = vmul.f32 %v1016, %v1016
      %v1083 = vmul.f32 %v1017, %v1017
      %v1084 = vmul.f32 %v1018, %v1018
      %v1085 = vmul.f32 %v1019, %v1019
      %v1086 = vmul.f32 %v1020, %v1020
      %v1087 = vmul.f32 %v1021, %v1021
      %v1088 = vmul.f32 %v1022, %v1022
      %v1089 = vmul.f32 %v1023, %v1023
      %v1090 = vmul.f32 %v1024, %v1024
      %v1091 = vmul.f32 %v1025, %v1025
      %v1092 = vmul.f32 %v1026, %v1026
      %v1093 = vmul.f32 %v1027, %v1027
      %v1094 = vmul.f32 %v1028, %v1028
      %v1095 = vmul.f32 %v1029, %v1029
      %v1096 = vmul.f32 %v1030, %v1030
      %v1097 = vmul.f32 %v1031, %v1031
      %v1098 = vmul.f32 %v1032, %v1032
      %v1099 = vmul.f32 %v1033, %v1033
      %v1100 = vmul.f32 %v1034, %v1034
      %v1101 = vmul.f32 %v1035, %v1035
      %v1102 = vmul.f32 %v1036, %v1036
      %v1103 = vmul.f32 %v1037, %v1037
      %v1104 = vmul.f32 %v1038, %v1038
      %v1105 = vmul.f32 %v1039, %v1039
      %v1106 = vmul.f32 %v1040, %v1040
      %v1107 = vmul.f32 %v1041, %v1041
      %v1108 = vmul.f32 %v1042, %v1042
      %v1109 = vmul.f32 %v1043, %v1043
      %v1110 = vmul.f32 %v1044, %v1044
      %v1111 = vmul.f32 %v1045, %v1045
      %v1112 = vmul.f32 %v1046, %v1046
      %v1113 = vmul.f32 %v1047, %v1047
      %v1114 = vmul.f32 %v1048, %v1048
      %v1115 = vmul.f32 %v1049, %v1049
      %v1116 = vmul.f32 %v1050, %v1050
      %v1117 = vmul.f32 %v1051, %v1051
      %v1118 = vmul.f32 %v1052, %v1052
      %v1119 = vmul.f32 %v1053, %v1053
      %v1120 = vmul.f32 %v1054, %v1054
      %v1121 = vmul.f32 %v1055, %v1055
      %v1122 = vmul.f32 %v1056, %v1056
      %v1123 = vmul.f32 %v1057, %v1057
      %v1124 = vmul.f32 %v1058, %v1058
      %v1125 = vmul.f32 %v1059, %v1059
      %v1126 = vmul.f32 %v1060, %v1060
      %v1127 = vmul.f32 %v1061, %v1061
      %v1128 = vmul.f32 %v1062, %v1062
      %v1129 = vmul.f32 %v1063, %v1063
      %v1130 = vmul.f32 %v1064, %v1064
      %v1131 = vmul.f32 %v1065, %v1065
      %v1132 = vmul.f32 %v1066, %v1066
      %v1133 = vmul.f32 %v1067, %v1067
      %v1134 = vmul.f32 %v1068, %v1068
      %v1135 = vmul.f32 %v1069, %v1069
      %v1136 = vmul.f32 %v1070, %v1070
      %v1137 = vmul.f32 %v1071, %v1071
      %v1138 = vmul.f32 %v1072, %v1072
      %v1139 = vmul.f32 %v1073, %v1073
      %v1140 = vmul.f32 %v1074, %v1074
      %v1141 = vmul.f32 %v1075, %v1075
      %v1142 = vmul.f32 %v1076, %v1076
      %v1143 = vmul.f32 %v1077, %v1077
      %v1144 = vmul.f32 %v1078, %v1078
      %v1145 = vmul.f32 %v1079, %v1079
      %v1146 = vadd.f32 %v1082, %v1083
      %v1147 = vadd.f32 %v1146, %v1084
      %v1148 = vadd.f32 %v1147, %v1085
      %v1149 = vadd.f32 %v1148, %v1086
      %v1150 = vadd.f32 %v1149, %v1087
      %v1151 = vadd.f32 %v1150, %v1088
      %v1152 = vadd.f32 %v1151, %v1089
      %v1153 = vadd.f32 %v1152, %v1090
      %v1154 = vadd.f32 %v1153, %v1091
      %v1155 = vadd.f32 %v1154, %v1092
      %v1156 = vadd.f32 %v1155, %v1093
      %v1157 = vadd.f32 %v1156, %v1094
      %v1158 = vadd.f32 %v1157, %v1095
      %v1159 = vadd.f32 %v1158, %v1096
      %v1160 = vadd.f32 %v1159, %v1097
      %v1161 = vadd.f32 %v1160, %v1098
      %v1162 = vadd.f32 %v1161, %v1099
      %v1163 = vadd.f32 %v1162, %v1100
      %v1164 = vadd.f32 %v1163, %v1101
      %v1165 = vadd.f32 %v1164, %v1102
      %v1166 = vadd.f32 %v1165, %v1103
      %v1167 = vadd.f32 %v1166, %v1104
      %v1168 = vadd.f32 %v1167, %v1105
      %v1169 = vadd.f32 %v1168, %v1106
      %v1170 = vadd.f32 %v1169, %v1107
      %v1171 = vadd.f32 %v1170, %v1108
      %v1172 = vadd.f32 %v1171, %v1109
      %v1173 = vadd.f32 %v1172, %v1110
      %v1174 = vadd.f32 %v1173, %v1111
      %v1175 = vadd.f32 %v1174, %v1112
      %v1176 = vadd.f32 %v1175, %v1113
      %v1177 = vadd.f32 %v1176, %v1114
      %v1178 = vadd.f32 %v1177, %v1115
      %v1179 = vadd.f32 %v1178, %v1116
      %v1180 = vadd.f32 %v1179, %v1117
      %v1181 = vadd.f32 %v1180, %v1118
      %v1182 = vadd.f32 %v1181, %v1119
      %v1183 = vadd.f32 %v1182, %v1120
      %v1184 = vadd.f32 %v1183, %v1121
      %v1185 = vadd.f32 %v1184, %v1122
      %v1186 = vadd.f32 %v1185, %v1123
      %v1187 = vadd.f32 %v1186, %v1124
      %v1188 = vadd.f32 %v1187, %v1125
      %v1189 = vadd.f32 %v1188, %v1126
      %v1190 = vadd.f32 %v1189, %v1127
      %v1191 = vadd.f32 %v1190, %v1128
      %v1192 = vadd.f32 %v1191, %v1129
      %v1193 = vadd.f32 %v1192, %v1130
      %v1194 = vadd.f32 %v1193, %v1131
      %v1195 = vadd.f32 %v1194, %v1132
      %v1196 = vadd.f32 %v1195, %v1133
      %v1197 = vadd.f32 %v1196, %v1134
      %v1198 = vadd.f32 %v1197, %v1135
      %v1199 = vadd.f32 %v1198, %v1136
      %v1200 = vadd.f32 %v1199, %v1137
      %v1201 = vadd.f32 %v1200, %v1138
      %v1202 = vadd.f32 %v1201, %v1139
      %v1203 = vadd.f32 %v1202, %v1140
      %v1204 = vadd.f32 %v1203, %v1141
      %v1205 = vadd.f32 %v1204, %v1142
      %v1206 = vadd.f32 %v1205, %v1143
      %v1207 = vadd.f32 %v1206, %v1144
      %v1208 = vadd.f32 %v1207, %v1145
      %1209 = vadd.xlane.f32.xlu0 %v1208
      %v1210 = vpop.xlane.xlu0 %1209
      %v1211 = vrot.slane %v1210, 4
      %v1212 = vadd.f32 %v1210, %v1211
      %v1213 = vrot.slane %v1212, 2
      %v1214 = vadd.f32 %v1212, %v1213
      %v1215 = vrot.slane %v1214, 1
      %v1216 = vadd.f32 %v1214, %v1215
      %s1217 = vtos %v1216
      %s1218 = smul.f32 %s1217, %s1081
      %vm1219 = vcmp.lt.s32.totalorder %v950, 192
      %vm1220 = vcmp.lt.s32.totalorder %v951, 192
      %vm1221 = vmand %vm952, %vm1219
      %vm1222 = vmand %vm953, %vm1220
      %vm1223 = vmand %vm954, %vm1219
      %vm1224 = vmand %vm955, %vm1220
      %vm1225 = vmand %vm956, %vm1219
      %vm1226 = vmand %vm957, %vm1220
      %vm1227 = vmand %vm958, %vm1219
      %vm1228 = vmand %vm959, %vm1220
      %vm1229 = vmand %vm960, %vm1219
      %vm1230 = vmand %vm961, %vm1220
      %vm1231 = vmand %vm962, %vm1219
      %vm1232 = vmand %vm963, %vm1220
      %vm1233 = vmand %vm964, %vm1219
      %vm1234 = vmand %vm965, %vm1220
      %vm1235 = vmand %vm966, %vm1219
      %vm1236 = vmand %vm967, %vm1220
      %vm1237 = vmand %vm968, %vm1219
      %vm1238 = vmand %vm969, %vm1220
      %vm1239 = vmand %vm970, %vm1219
      %vm1240 = vmand %vm971, %vm1220
      %vm1241 = vmand %vm972, %vm1219
      %vm1242 = vmand %vm973, %vm1220
      %vm1243 = vmand %vm974, %vm1219
      %vm1244 = vmand %vm975, %vm1220
      %vm1245 = vmand %vm976, %vm1219
      %vm1246 = vmand %vm977, %vm1220
      %vm1247 = vmand %vm978, %vm1219
      %vm1248 = vmand %vm979, %vm1220
      %vm1249 = vmand %vm980, %vm1219
      %vm1250 = vmand %vm981, %vm1220
      %vm1251 = vmand %vm982, %vm1219
      %vm1252 = vmand %vm983, %vm1220
      %vm1253 = vmand %vm984, %vm1219
      %vm1254 = vmand %vm985, %vm1220
      %vm1255 = vmand %vm986, %vm1219
      %vm1256 = vmand %vm987, %vm1220
      %vm1257 = vmand %vm988, %vm1219
      %vm1258 = vmand %vm989, %vm1220
      %vm1259 = vmand %vm990, %vm1219
      %vm1260 = vmand %vm991, %vm1220
      %vm1261 = vmand %vm992, %vm1219
      %vm1262 = vmand %vm993, %vm1220
      %vm1263 = vmand %vm994, %vm1219
      %vm1264 = vmand %vm995, %vm1220
      %vm1265 = vmand %vm996, %vm1219
      %vm1266 = vmand %vm997, %vm1220
      %vm1267 = vmand %vm998, %vm1219
      %vm1268 = vmand %vm999, %vm1220
      %vm1269 = vmand %vm1000, %vm1219
      %vm1270 = vmand %vm1001, %vm1220
      %vm1271 = vmand %vm1002, %vm1219
      %vm1272 = vmand %vm1003, %vm1220
      %vm1273 = vmand %vm1004, %vm1219
      %vm1274 = vmand %vm1005, %vm1220
      %vm1275 = vmand %vm1006, %vm1219
      %vm1276 = vmand %vm1007, %vm1220
      %vm1277 = vmand %vm1008, %vm1219
      %vm1278 = vmand %vm1009, %vm1220
      %vm1279 = vmand %vm1010, %vm1219
      %vm1280 = vmand %vm1011, %vm1220
      %vm1281 = vmand %vm1012, %vm1219
      %vm1282 = vmand %vm1013, %vm1220
      %vm1283 = vmand %vm1014, %vm1219
      %vm1284 = vmand %vm1015, %vm1220
      %v1285 = vmax.f32 %v814, 0.0
      %v1286 = vmax.f32 %v815, 0.0
      %v1287 = vmax.f32 %v816, 0.0
      %v1288 = vmax.f32 %v817, 0.0
      %v1289 = vmax.f32 %v818, 0.0
      %v1290 = vmax.f32 %v819, 0.0
      %v1291 = vmax.f32 %v820, 0.0
      %v1292 = vmax.f32 %v821, 0.0
      %v1293 = vmax.f32 %v822, 0.0
      %v1294 = vmax.f32 %v823, 0.0
      %v1295 = vmax.f32 %v824, 0.0
      %v1296 = vmax.f32 %v825, 0.0
      %v1297 = vmax.f32 %v826, 0.0
      %v1298 = vmax.f32 %v827, 0.0
      %v1299 = vmax.f32 %v828, 0.0
      %v1300 = vmax.f32 %v829, 0.0
      %v1301 = vmax.f32 %v830, 0.0
      %v1302 = vmax.f32 %v831, 0.0
      %v1303 = vmax.f32 %v832, 0.0
      %v1304 = vmax.f32 %v833, 0.0
      %v1305 = vmax.f32 %v834, 0.0
      %v1306 = vmax.f32 %v835, 0.0
      %v1307 = vmax.f32 %v836, 0.0
      %v1308 = vmax.f32 %v837, 0.0
      %v1309 = vmax.f32 %v838, 0.0
      %v1310 = vmax.f32 %v839, 0.0
      %v1311 = vmax.f32 %v840, 0.0
      %v1312 = vmax.f32 %v841, 0.0
      %v1313 = vmax.f32 %v842, 0.0
      %v1314 = vmax.f32 %v843, 0.0
      %v1315 = vmax.f32 %v844, 0.0
      %v1316 = vmax.f32 %v845, 0.0
      %v1317 = vmax.f32 %v846, 0.0
      %v1318 = vmax.f32 %v847, 0.0
      %v1319 = vmax.f32 %v848, 0.0
      %v1320 = vmax.f32 %v849, 0.0
      %v1321 = vmax.f32 %v850, 0.0
      %v1322 = vmax.f32 %v851, 0.0
      %v1323 = vmax.f32 %v852, 0.0
      %v1324 = vmax.f32 %v853, 0.0
      %v1325 = vmax.f32 %v854, 0.0
      %v1326 = vmax.f32 %v855, 0.0
      %v1327 = vmax.f32 %v856, 0.0
      %v1328 = vmax.f32 %v857, 0.0
      %v1329 = vmax.f32 %v858, 0.0
      %v1330 = vmax.f32 %v859, 0.0
      %v1331 = vmax.f32 %v860, 0.0
      %v1332 = vmax.f32 %v861, 0.0
      %v1333 = vmax.f32 %v862, 0.0
      %v1334 = vmax.f32 %v863, 0.0
      %v1335 = vmax.f32 %v864, 0.0
      %v1336 = vmax.f32 %v865, 0.0
      %v1337 = vmax.f32 %v866, 0.0
      %v1338 = vmax.f32 %v867, 0.0
      %v1339 = vmax.f32 %v868, 0.0
      %v1340 = vmax.f32 %v869, 0.0
      %v1341 = vmax.f32 %v870, 0.0
      %v1342 = vmax.f32 %v871, 0.0
      %v1343 = vmax.f32 %v872, 0.0
      %v1344 = vmax.f32 %v873, 0.0
      %v1345 = vmax.f32 %v874, 0.0
      %v1346 = vmax.f32 %v875, 0.0
      %v1347 = vmax.f32 %v876, 0.0
      %v1348 = vmax.f32 %v877, 0.0
      %v1349 = vadd.f32 %v1285, 0.0001
      %v1350 = vadd.f32 %v1286, 0.0001
      %v1351 = vadd.f32 %v1287, 0.0001
      %v1352 = vadd.f32 %v1288, 0.0001
      %v1353 = vadd.f32 %v1289, 0.0001
      %v1354 = vadd.f32 %v1290, 0.0001
      %v1355 = vadd.f32 %v1291, 0.0001
      %v1356 = vadd.f32 %v1292, 0.0001
      %v1357 = vadd.f32 %v1293, 0.0001
      %v1358 = vadd.f32 %v1294, 0.0001
      %v1359 = vadd.f32 %v1295, 0.0001
      %v1360 = vadd.f32 %v1296, 0.0001
      %v1361 = vadd.f32 %v1297, 0.0001
      %v1362 = vadd.f32 %v1298, 0.0001
      %v1363 = vadd.f32 %v1299, 0.0001
      %v1364 = vadd.f32 %v1300, 0.0001
      %v1365 = vadd.f32 %v1301, 0.0001
      %v1366 = vadd.f32 %v1302, 0.0001
      %v1367 = vadd.f32 %v1303, 0.0001
      %v1368 = vadd.f32 %v1304, 0.0001
      %v1369 = vadd.f32 %v1305, 0.0001
      %v1370 = vadd.f32 %v1306, 0.0001
      %v1371 = vadd.f32 %v1307, 0.0001
      %v1372 = vadd.f32 %v1308, 0.0001
      %v1373 = vadd.f32 %v1309, 0.0001
      %v1374 = vadd.f32 %v1310, 0.0001
      %v1375 = vadd.f32 %v1311, 0.0001
      %v1376 = vadd.f32 %v1312, 0.0001
      %v1377 = vadd.f32 %v1313, 0.0001
      %v1378 = vadd.f32 %v1314, 0.0001
      %v1379 = vadd.f32 %v1315, 0.0001
      %v1380 = vadd.f32 %v1316, 0.0001
      %v1381 = vadd.f32 %v1317, 0.0001
      %v1382 = vadd.f32 %v1318, 0.0001
      %v1383 = vadd.f32 %v1319, 0.0001
      %v1384 = vadd.f32 %v1320, 0.0001
      %v1385 = vadd.f32 %v1321, 0.0001
      %v1386 = vadd.f32 %v1322, 0.0001
      %v1387 = vadd.f32 %v1323, 0.0001
      %v1388 = vadd.f32 %v1324, 0.0001
      %v1389 = vadd.f32 %v1325, 0.0001
      %v1390 = vadd.f32 %v1326, 0.0001
      %v1391 = vadd.f32 %v1327, 0.0001
      %v1392 = vadd.f32 %v1328, 0.0001
      %v1393 = vadd.f32 %v1329, 0.0001
      %v1394 = vadd.f32 %v1330, 0.0001
      %v1395 = vadd.f32 %v1331, 0.0001
      %v1396 = vadd.f32 %v1332, 0.0001
      %v1397 = vadd.f32 %v1333, 0.0001
      %v1398 = vadd.f32 %v1334, 0.0001
      %v1399 = vadd.f32 %v1335, 0.0001
      %v1400 = vadd.f32 %v1336, 0.0001
      %v1401 = vadd.f32 %v1337, 0.0001
      %v1402 = vadd.f32 %v1338, 0.0001
      %v1403 = vadd.f32 %v1339, 0.0001
      %v1404 = vadd.f32 %v1340, 0.0001
      %v1405 = vadd.f32 %v1341, 0.0001
      %v1406 = vadd.f32 %v1342, 0.0001
      %v1407 = vadd.f32 %v1343, 0.0001
      %v1408 = vadd.f32 %v1344, 0.0001
      %v1409 = vadd.f32 %v1345, 0.0001
      %v1410 = vadd.f32 %v1346, 0.0001
      %v1411 = vadd.f32 %v1347, 0.0001
      %v1412 = vadd.f32 %v1348, 0.0001
      %v1413 = vrsqrt.pop %v1349
      %v1414 = vmul.f32 %v1349, %v1413
      %vm1415 = vcmp.eq.f32.partialorder %v1349, inf
      %v1416 = vsel %vm1415, %v1349, %v1414
      %vm1417 = vcmp.eq.f32.partialorder %v1349, 0.0
      %v1418 = vand.u32 %v1349, 2147483648
      %v1419 = vsel %vm1417, %v1418, %v1416
      %v1420 = vrsqrt.pop %v1350
      %v1421 = vmul.f32 %v1350, %v1420
      %vm1422 = vcmp.eq.f32.partialorder %v1350, inf
      %v1423 = vsel %vm1422, %v1350, %v1421
      %vm1424 = vcmp.eq.f32.partialorder %v1350, 0.0
      %v1425 = vand.u32 %v1350, 2147483648
      %v1426 = vsel %vm1424, %v1425, %v1423
      %v1427 = vrsqrt.pop %v1351
      %v1428 = vmul.f32 %v1351, %v1427
      %vm1429 = vcmp.eq.f32.partialorder %v1351, inf
      %v1430 = vsel %vm1429, %v1351, %v1428
      %vm1431 = vcmp.eq.f32.partialorder %v1351, 0.0
      %v1432 = vand.u32 %v1351, 2147483648
      %v1433 = vsel %vm1431, %v1432, %v1430
      %v1434 = vrsqrt.pop %v1352
      %v1435 = vmul.f32 %v1352, %v1434
      %vm1436 = vcmp.eq.f32.partialorder %v1352, inf
      %v1437 = vsel %vm1436, %v1352, %v1435
      %vm1438 = vcmp.eq.f32.partialorder %v1352, 0.0
      %v1439 = vand.u32 %v1352, 2147483648
      %v1440 = vsel %vm1438, %v1439, %v1437
      %v1441 = vrsqrt.pop %v1353
      %v1442 = vmul.f32 %v1353, %v1441
      %vm1443 = vcmp.eq.f32.partialorder %v1353, inf
      %v1444 = vsel %vm1443, %v1353, %v1442
      %vm1445 = vcmp.eq.f32.partialorder %v1353, 0.0
      %v1446 = vand.u32 %v1353, 2147483648
      %v1447 = vsel %vm1445, %v1446, %v1444
      %v1448 = vrsqrt.pop %v1354
      %v1449 = vmul.f32 %v1354, %v1448
      %vm1450 = vcmp.eq.f32.partialorder %v1354, inf
      %v1451 = vsel %vm1450, %v1354, %v1449
      %vm1452 = vcmp.eq.f32.partialorder %v1354, 0.0
      %v1453 = vand.u32 %v1354, 2147483648
      %v1454 = vsel %vm1452, %v1453, %v1451
      %v1455 = vrsqrt.pop %v1355
      %v1456 = vmul.f32 %v1355, %v1455
      %vm1457 = vcmp.eq.f32.partialorder %v1355, inf
      %v1458 = vsel %vm1457, %v1355, %v1456
      %vm1459 = vcmp.eq.f32.partialorder %v1355, 0.0
      %v1460 = vand.u32 %v1355, 2147483648
      %v1461 = vsel %vm1459, %v1460, %v1458
      %v1462 = vrsqrt.pop %v1356
      %v1463 = vmul.f32 %v1356, %v1462
      %vm1464 = vcmp.eq.f32.partialorder %v1356, inf
      %v1465 = vsel %vm1464, %v1356, %v1463
      %vm1466 = vcmp.eq.f32.partialorder %v1356, 0.0
      %v1467 = vand.u32 %v1356, 2147483648
      %v1468 = vsel %vm1466, %v1467, %v1465
      %v1469 = vrsqrt.pop %v1357
      %v1470 = vmul.f32 %v1357, %v1469
      %vm1471 = vcmp.eq.f32.partialorder %v1357, inf
      %v1472 = vsel %vm1471, %v1357, %v1470
      %vm1473 = vcmp.eq.f32.partialorder %v1357, 0.0
      %v1474 = vand.u32 %v1357, 2147483648
      %v1475 = vsel %vm1473, %v1474, %v1472
      %v1476 = vrsqrt.pop %v1358
      %v1477 = vmul.f32 %v1358, %v1476
      %vm1478 = vcmp.eq.f32.partialorder %v1358, inf
      %v1479 = vsel %vm1478, %v1358, %v1477
      %vm1480 = vcmp.eq.f32.partialorder %v1358, 0.0
      %v1481 = vand.u32 %v1358, 2147483648
      %v1482 = vsel %vm1480, %v1481, %v1479
      %v1483 = vrsqrt.pop %v1359
      %v1484 = vmul.f32 %v1359, %v1483
      %vm1485 = vcmp.eq.f32.partialorder %v1359, inf
      %v1486 = vsel %vm1485, %v1359, %v1484
      %vm1487 = vcmp.eq.f32.partialorder %v1359, 0.0
      %v1488 = vand.u32 %v1359, 2147483648
      %v1489 = vsel %vm1487, %v1488, %v1486
      %v1490 = vrsqrt.pop %v1360
      %v1491 = vmul.f32 %v1360, %v1490
      %vm1492 = vcmp.eq.f32.partialorder %v1360, inf
      %v1493 = vsel %vm1492, %v1360, %v1491
      %vm1494 = vcmp.eq.f32.partialorder %v1360, 0.0
      %v1495 = vand.u32 %v1360, 2147483648
      %v1496 = vsel %vm1494, %v1495, %v1493
      %v1497 = vrsqrt.pop %v1361
      %v1498 = vmul.f32 %v1361, %v1497
      %vm1499 = vcmp.eq.f32.partialorder %v1361, inf
      %v1500 = vsel %vm1499, %v1361, %v1498
      %vm1501 = vcmp.eq.f32.partialorder %v1361, 0.0
      %v1502 = vand.u32 %v1361, 2147483648
      %v1503 = vsel %vm1501, %v1502, %v1500
      %v1504 = vrsqrt.pop %v1362
      %v1505 = vmul.f32 %v1362, %v1504
      %vm1506 = vcmp.eq.f32.partialorder %v1362, inf
      %v1507 = vsel %vm1506, %v1362, %v1505
      %vm1508 = vcmp.eq.f32.partialorder %v1362, 0.0
      %v1509 = vand.u32 %v1362, 2147483648
      %v1510 = vsel %vm1508, %v1509, %v1507
      %v1511 = vrsqrt.pop %v1363
      %v1512 = vmul.f32 %v1363, %v1511
      %vm1513 = vcmp.eq.f32.partialorder %v1363, inf
      %v1514 = vsel %vm1513, %v1363, %v1512
      %vm1515 = vcmp.eq.f32.partialorder %v1363, 0.0
      %v1516 = vand.u32 %v1363, 2147483648
      %v1517 = vsel %vm1515, %v1516, %v1514
      %v1518 = vrsqrt.pop %v1364
      %v1519 = vmul.f32 %v1364, %v1518
      %vm1520 = vcmp.eq.f32.partialorder %v1364, inf
      %v1521 = vsel %vm1520, %v1364, %v1519
      %vm1522 = vcmp.eq.f32.partialorder %v1364, 0.0
      %v1523 = vand.u32 %v1364, 2147483648
      %v1524 = vsel %vm1522, %v1523, %v1521
      %v1525 = vrsqrt.pop %v1365
      %v1526 = vmul.f32 %v1365, %v1525
      %vm1527 = vcmp.eq.f32.partialorder %v1365, inf
      %v1528 = vsel %vm1527, %v1365, %v1526
      %vm1529 = vcmp.eq.f32.partialorder %v1365, 0.0
      %v1530 = vand.u32 %v1365, 2147483648
      %v1531 = vsel %vm1529, %v1530, %v1528
      %v1532 = vrsqrt.pop %v1366
      %v1533 = vmul.f32 %v1366, %v1532
      %vm1534 = vcmp.eq.f32.partialorder %v1366, inf
      %v1535 = vsel %vm1534, %v1366, %v1533
      %vm1536 = vcmp.eq.f32.partialorder %v1366, 0.0
      %v1537 = vand.u32 %v1366, 2147483648
      %v1538 = vsel %vm1536, %v1537, %v1535
      %v1539 = vrsqrt.pop %v1367
      %v1540 = vmul.f32 %v1367, %v1539
      %vm1541 = vcmp.eq.f32.partialorder %v1367, inf
      %v1542 = vsel %vm1541, %v1367, %v1540
      %vm1543 = vcmp.eq.f32.partialorder %v1367, 0.0
      %v1544 = vand.u32 %v1367, 2147483648
      %v1545 = vsel %vm1543, %v1544, %v1542
      %v1546 = vrsqrt.pop %v1368
      %v1547 = vmul.f32 %v1368, %v1546
      %vm1548 = vcmp.eq.f32.partialorder %v1368, inf
      %v1549 = vsel %vm1548, %v1368, %v1547
      %vm1550 = vcmp.eq.f32.partialorder %v1368, 0.0
      %v1551 = vand.u32 %v1368, 2147483648
      %v1552 = vsel %vm1550, %v1551, %v1549
      %v1553 = vrsqrt.pop %v1369
      %v1554 = vmul.f32 %v1369, %v1553
      %vm1555 = vcmp.eq.f32.partialorder %v1369, inf
      %v1556 = vsel %vm1555, %v1369, %v1554
      %vm1557 = vcmp.eq.f32.partialorder %v1369, 0.0
      %v1558 = vand.u32 %v1369, 2147483648
      %v1559 = vsel %vm1557, %v1558, %v1556
      %v1560 = vrsqrt.pop %v1370
      %v1561 = vmul.f32 %v1370, %v1560
      %vm1562 = vcmp.eq.f32.partialorder %v1370, inf
      %v1563 = vsel %vm1562, %v1370, %v1561
      %vm1564 = vcmp.eq.f32.partialorder %v1370, 0.0
      %v1565 = vand.u32 %v1370, 2147483648
      %v1566 = vsel %vm1564, %v1565, %v1563
      %v1567 = vrsqrt.pop %v1371
      %v1568 = vmul.f32 %v1371, %v1567
      %vm1569 = vcmp.eq.f32.partialorder %v1371, inf
      %v1570 = vsel %vm1569, %v1371, %v1568
      %vm1571 = vcmp.eq.f32.partialorder %v1371, 0.0
      %v1572 = vand.u32 %v1371, 2147483648
      %v1573 = vsel %vm1571, %v1572, %v1570
      %v1574 = vrsqrt.pop %v1372
      %v1575 = vmul.f32 %v1372, %v1574
      %vm1576 = vcmp.eq.f32.partialorder %v1372, inf
      %v1577 = vsel %vm1576, %v1372, %v1575
      %vm1578 = vcmp.eq.f32.partialorder %v1372, 0.0
      %v1579 = vand.u32 %v1372, 2147483648
      %v1580 = vsel %vm1578, %v1579, %v1577
      %v1581 = vrsqrt.pop %v1373
      %v1582 = vmul.f32 %v1373, %v1581
      %vm1583 = vcmp.eq.f32.partialorder %v1373, inf
      %v1584 = vsel %vm1583, %v1373, %v1582
      %vm1585 = vcmp.eq.f32.partialorder %v1373, 0.0
      %v1586 = vand.u32 %v1373, 2147483648
      %v1587 = vsel %vm1585, %v1586, %v1584
      %v1588 = vrsqrt.pop %v1374
      %v1589 = vmul.f32 %v1374, %v1588
      %vm1590 = vcmp.eq.f32.partialorder %v1374, inf
      %v1591 = vsel %vm1590, %v1374, %v1589
      %vm1592 = vcmp.eq.f32.partialorder %v1374, 0.0
      %v1593 = vand.u32 %v1374, 2147483648
      %v1594 = vsel %vm1592, %v1593, %v1591
      %v1595 = vrsqrt.pop %v1375
      %v1596 = vmul.f32 %v1375, %v1595
      %vm1597 = vcmp.eq.f32.partialorder %v1375, inf
      %v1598 = vsel %vm1597, %v1375, %v1596
      %vm1599 = vcmp.eq.f32.partialorder %v1375, 0.0
      %v1600 = vand.u32 %v1375, 2147483648
      %v1601 = vsel %vm1599, %v1600, %v1598
      %v1602 = vrsqrt.pop %v1376
      %v1603 = vmul.f32 %v1376, %v1602
      %vm1604 = vcmp.eq.f32.partialorder %v1376, inf
      %v1605 = vsel %vm1604, %v1376, %v1603
      %vm1606 = vcmp.eq.f32.partialorder %v1376, 0.0
      %v1607 = vand.u32 %v1376, 2147483648
      %v1608 = vsel %vm1606, %v1607, %v1605
      %v1609 = vrsqrt.pop %v1377
      %v1610 = vmul.f32 %v1377, %v1609
      %vm1611 = vcmp.eq.f32.partialorder %v1377, inf
      %v1612 = vsel %vm1611, %v1377, %v1610
      %vm1613 = vcmp.eq.f32.partialorder %v1377, 0.0
      %v1614 = vand.u32 %v1377, 2147483648
      %v1615 = vsel %vm1613, %v1614, %v1612
      %v1616 = vrsqrt.pop %v1378
      %v1617 = vmul.f32 %v1378, %v1616
      %vm1618 = vcmp.eq.f32.partialorder %v1378, inf
      %v1619 = vsel %vm1618, %v1378, %v1617
      %vm1620 = vcmp.eq.f32.partialorder %v1378, 0.0
      %v1621 = vand.u32 %v1378, 2147483648
      %v1622 = vsel %vm1620, %v1621, %v1619
      %v1623 = vrsqrt.pop %v1379
      %v1624 = vmul.f32 %v1379, %v1623
      %vm1625 = vcmp.eq.f32.partialorder %v1379, inf
      %v1626 = vsel %vm1625, %v1379, %v1624
      %vm1627 = vcmp.eq.f32.partialorder %v1379, 0.0
      %v1628 = vand.u32 %v1379, 2147483648
      %v1629 = vsel %vm1627, %v1628, %v1626
      %v1630 = vrsqrt.pop %v1380
      %v1631 = vmul.f32 %v1380, %v1630
      %vm1632 = vcmp.eq.f32.partialorder %v1380, inf
      %v1633 = vsel %vm1632, %v1380, %v1631
      %vm1634 = vcmp.eq.f32.partialorder %v1380, 0.0
      %v1635 = vand.u32 %v1380, 2147483648
      %v1636 = vsel %vm1634, %v1635, %v1633
      %v1637 = vrsqrt.pop %v1381
      %v1638 = vmul.f32 %v1381, %v1637
      %vm1639 = vcmp.eq.f32.partialorder %v1381, inf
      %v1640 = vsel %vm1639, %v1381, %v1638
      %vm1641 = vcmp.eq.f32.partialorder %v1381, 0.0
      %v1642 = vand.u32 %v1381, 2147483648
      %v1643 = vsel %vm1641, %v1642, %v1640
      %v1644 = vrsqrt.pop %v1382
      %v1645 = vmul.f32 %v1382, %v1644
      %vm1646 = vcmp.eq.f32.partialorder %v1382, inf
      %v1647 = vsel %vm1646, %v1382, %v1645
      %vm1648 = vcmp.eq.f32.partialorder %v1382, 0.0
      %v1649 = vand.u32 %v1382, 2147483648
      %v1650 = vsel %vm1648, %v1649, %v1647
      %v1651 = vrsqrt.pop %v1383
      %v1652 = vmul.f32 %v1383, %v1651
      %vm1653 = vcmp.eq.f32.partialorder %v1383, inf
      %v1654 = vsel %vm1653, %v1383, %v1652
      %vm1655 = vcmp.eq.f32.partialorder %v1383, 0.0
      %v1656 = vand.u32 %v1383, 2147483648
      %v1657 = vsel %vm1655, %v1656, %v1654
      %v1658 = vrsqrt.pop %v1384
      %v1659 = vmul.f32 %v1384, %v1658
      %vm1660 = vcmp.eq.f32.partialorder %v1384, inf
      %v1661 = vsel %vm1660, %v1384, %v1659
      %vm1662 = vcmp.eq.f32.partialorder %v1384, 0.0
      %v1663 = vand.u32 %v1384, 2147483648
      %v1664 = vsel %vm1662, %v1663, %v1661
      %v1665 = vrsqrt.pop %v1385
      %v1666 = vmul.f32 %v1385, %v1665
      %vm1667 = vcmp.eq.f32.partialorder %v1385, inf
      %v1668 = vsel %vm1667, %v1385, %v1666
      %vm1669 = vcmp.eq.f32.partialorder %v1385, 0.0
      %v1670 = vand.u32 %v1385, 2147483648
      %v1671 = vsel %vm1669, %v1670, %v1668
      %v1672 = vrsqrt.pop %v1386
      %v1673 = vmul.f32 %v1386, %v1672
      %vm1674 = vcmp.eq.f32.partialorder %v1386, inf
      %v1675 = vsel %vm1674, %v1386, %v1673
      %vm1676 = vcmp.eq.f32.partialorder %v1386, 0.0
      %v1677 = vand.u32 %v1386, 2147483648
      %v1678 = vsel %vm1676, %v1677, %v1675
      %v1679 = vrsqrt.pop %v1387
      %v1680 = vmul.f32 %v1387, %v1679
      %vm1681 = vcmp.eq.f32.partialorder %v1387, inf
      %v1682 = vsel %vm1681, %v1387, %v1680
      %vm1683 = vcmp.eq.f32.partialorder %v1387, 0.0
      %v1684 = vand.u32 %v1387, 2147483648
      %v1685 = vsel %vm1683, %v1684, %v1682
      %v1686 = vrsqrt.pop %v1388
      %v1687 = vmul.f32 %v1388, %v1686
      %vm1688 = vcmp.eq.f32.partialorder %v1388, inf
      %v1689 = vsel %vm1688, %v1388, %v1687
      %vm1690 = vcmp.eq.f32.partialorder %v1388, 0.0
      %v1691 = vand.u32 %v1388, 2147483648
      %v1692 = vsel %vm1690, %v1691, %v1689
      %v1693 = vrsqrt.pop %v1389
      %v1694 = vmul.f32 %v1389, %v1693
      %vm1695 = vcmp.eq.f32.partialorder %v1389, inf
      %v1696 = vsel %vm1695, %v1389, %v1694
      %vm1697 = vcmp.eq.f32.partialorder %v1389, 0.0
      %v1698 = vand.u32 %v1389, 2147483648
      %v1699 = vsel %vm1697, %v1698, %v1696
      %v1700 = vrsqrt.pop %v1390
      %v1701 = vmul.f32 %v1390, %v1700
      %vm1702 = vcmp.eq.f32.partialorder %v1390, inf
      %v1703 = vsel %vm1702, %v1390, %v1701
      %vm1704 = vcmp.eq.f32.partialorder %v1390, 0.0
      %v1705 = vand.u32 %v1390, 2147483648
      %v1706 = vsel %vm1704, %v1705, %v1703
      %v1707 = vrsqrt.pop %v1391
      %v1708 = vmul.f32 %v1391, %v1707
      %vm1709 = vcmp.eq.f32.partialorder %v1391, inf
      %v1710 = vsel %vm1709, %v1391, %v1708
      %vm1711 = vcmp.eq.f32.partialorder %v1391, 0.0
      %v1712 = vand.u32 %v1391, 2147483648
      %v1713 = vsel %vm1711, %v1712, %v1710
      %v1714 = vrsqrt.pop %v1392
      %v1715 = vmul.f32 %v1392, %v1714
      %vm1716 = vcmp.eq.f32.partialorder %v1392, inf
      %v1717 = vsel %vm1716, %v1392, %v1715
      %vm1718 = vcmp.eq.f32.partialorder %v1392, 0.0
      %v1719 = vand.u32 %v1392, 2147483648
      %v1720 = vsel %vm1718, %v1719, %v1717
      %v1721 = vrsqrt.pop %v1393
      %v1722 = vmul.f32 %v1393, %v1721
      %vm1723 = vcmp.eq.f32.partialorder %v1393, inf
      %v1724 = vsel %vm1723, %v1393, %v1722
      %vm1725 = vcmp.eq.f32.partialorder %v1393, 0.0
      %v1726 = vand.u32 %v1393, 2147483648
      %v1727 = vsel %vm1725, %v1726, %v1724
      %v1728 = vrsqrt.pop %v1394
      %v1729 = vmul.f32 %v1394, %v1728
      %vm1730 = vcmp.eq.f32.partialorder %v1394, inf
      %v1731 = vsel %vm1730, %v1394, %v1729
      %vm1732 = vcmp.eq.f32.partialorder %v1394, 0.0
      %v1733 = vand.u32 %v1394, 2147483648
      %v1734 = vsel %vm1732, %v1733, %v1731
      %v1735 = vrsqrt.pop %v1395
      %v1736 = vmul.f32 %v1395, %v1735
      %vm1737 = vcmp.eq.f32.partialorder %v1395, inf
      %v1738 = vsel %vm1737, %v1395, %v1736
      %vm1739 = vcmp.eq.f32.partialorder %v1395, 0.0
      %v1740 = vand.u32 %v1395, 2147483648
      %v1741 = vsel %vm1739, %v1740, %v1738
      %v1742 = vrsqrt.pop %v1396
      %v1743 = vmul.f32 %v1396, %v1742
      %vm1744 = vcmp.eq.f32.partialorder %v1396, inf
      %v1745 = vsel %vm1744, %v1396, %v1743
      %vm1746 = vcmp.eq.f32.partialorder %v1396, 0.0
      %v1747 = vand.u32 %v1396, 2147483648
      %v1748 = vsel %vm1746, %v1747, %v1745
      %v1749 = vrsqrt.pop %v1397
      %v1750 = vmul.f32 %v1397, %v1749
      %vm1751 = vcmp.eq.f32.partialorder %v1397, inf
      %v1752 = vsel %vm1751, %v1397, %v1750
      %vm1753 = vcmp.eq.f32.partialorder %v1397, 0.0
      %v1754 = vand.u32 %v1397, 2147483648
      %v1755 = vsel %vm1753, %v1754, %v1752
      %v1756 = vrsqrt.pop %v1398
      %v1757 = vmul.f32 %v1398, %v1756
      %vm1758 = vcmp.eq.f32.partialorder %v1398, inf
      %v1759 = vsel %vm1758, %v1398, %v1757
      %vm1760 = vcmp.eq.f32.partialorder %v1398, 0.0
      %v1761 = vand.u32 %v1398, 2147483648
      %v1762 = vsel %vm1760, %v1761, %v1759
      %v1763 = vrsqrt.pop %v1399
      %v1764 = vmul.f32 %v1399, %v1763
      %vm1765 = vcmp.eq.f32.partialorder %v1399, inf
      %v1766 = vsel %vm1765, %v1399, %v1764
      %vm1767 = vcmp.eq.f32.partialorder %v1399, 0.0
      %v1768 = vand.u32 %v1399, 2147483648
      %v1769 = vsel %vm1767, %v1768, %v1766
      %v1770 = vrsqrt.pop %v1400
      %v1771 = vmul.f32 %v1400, %v1770
      %vm1772 = vcmp.eq.f32.partialorder %v1400, inf
      %v1773 = vsel %vm1772, %v1400, %v1771
      %vm1774 = vcmp.eq.f32.partialorder %v1400, 0.0
      %v1775 = vand.u32 %v1400, 2147483648
      %v1776 = vsel %vm1774, %v1775, %v1773
      %v1777 = vrsqrt.pop %v1401
      %v1778 = vmul.f32 %v1401, %v1777
      %vm1779 = vcmp.eq.f32.partialorder %v1401, inf
      %v1780 = vsel %vm1779, %v1401, %v1778
      %vm1781 = vcmp.eq.f32.partialorder %v1401, 0.0
      %v1782 = vand.u32 %v1401, 2147483648
      %v1783 = vsel %vm1781, %v1782, %v1780
      %v1784 = vrsqrt.pop %v1402
      %v1785 = vmul.f32 %v1402, %v1784
      %vm1786 = vcmp.eq.f32.partialorder %v1402, inf
      %v1787 = vsel %vm1786, %v1402, %v1785
      %vm1788 = vcmp.eq.f32.partialorder %v1402, 0.0
      %v1789 = vand.u32 %v1402, 2147483648
      %v1790 = vsel %vm1788, %v1789, %v1787
      %v1791 = vrsqrt.pop %v1403
      %v1792 = vmul.f32 %v1403, %v1791
      %vm1793 = vcmp.eq.f32.partialorder %v1403, inf
      %v1794 = vsel %vm1793, %v1403, %v1792
      %vm1795 = vcmp.eq.f32.partialorder %v1403, 0.0
      %v1796 = vand.u32 %v1403, 2147483648
      %v1797 = vsel %vm1795, %v1796, %v1794
      %v1798 = vrsqrt.pop %v1404
      %v1799 = vmul.f32 %v1404, %v1798
      %vm1800 = vcmp.eq.f32.partialorder %v1404, inf
      %v1801 = vsel %vm1800, %v1404, %v1799
      %vm1802 = vcmp.eq.f32.partialorder %v1404, 0.0
      %v1803 = vand.u32 %v1404, 2147483648
      %v1804 = vsel %vm1802, %v1803, %v1801
      %v1805 = vrsqrt.pop %v1405
      %v1806 = vmul.f32 %v1405, %v1805
      %vm1807 = vcmp.eq.f32.partialorder %v1405, inf
      %v1808 = vsel %vm1807, %v1405, %v1806
      %vm1809 = vcmp.eq.f32.partialorder %v1405, 0.0
      %v1810 = vand.u32 %v1405, 2147483648
      %v1811 = vsel %vm1809, %v1810, %v1808
      %v1812 = vrsqrt.pop %v1406
      %v1813 = vmul.f32 %v1406, %v1812
      %vm1814 = vcmp.eq.f32.partialorder %v1406, inf
      %v1815 = vsel %vm1814, %v1406, %v1813
      %vm1816 = vcmp.eq.f32.partialorder %v1406, 0.0
      %v1817 = vand.u32 %v1406, 2147483648
      %v1818 = vsel %vm1816, %v1817, %v1815
      %v1819 = vrsqrt.pop %v1407
      %v1820 = vmul.f32 %v1407, %v1819
      %vm1821 = vcmp.eq.f32.partialorder %v1407, inf
      %v1822 = vsel %vm1821, %v1407, %v1820
      %vm1823 = vcmp.eq.f32.partialorder %v1407, 0.0
      %v1824 = vand.u32 %v1407, 2147483648
      %v1825 = vsel %vm1823, %v1824, %v1822
      %v1826 = vrsqrt.pop %v1408
      %v1827 = vmul.f32 %v1408, %v1826
      %vm1828 = vcmp.eq.f32.partialorder %v1408, inf
      %v1829 = vsel %vm1828, %v1408, %v1827
      %vm1830 = vcmp.eq.f32.partialorder %v1408, 0.0
      %v1831 = vand.u32 %v1408, 2147483648
      %v1832 = vsel %vm1830, %v1831, %v1829
      %v1833 = vrsqrt.pop %v1409
      %v1834 = vmul.f32 %v1409, %v1833
      %vm1835 = vcmp.eq.f32.partialorder %v1409, inf
      %v1836 = vsel %vm1835, %v1409, %v1834
      %vm1837 = vcmp.eq.f32.partialorder %v1409, 0.0
      %v1838 = vand.u32 %v1409, 2147483648
      %v1839 = vsel %vm1837, %v1838, %v1836
      %v1840 = vrsqrt.pop %v1410
      %v1841 = vmul.f32 %v1410, %v1840
      %vm1842 = vcmp.eq.f32.partialorder %v1410, inf
      %v1843 = vsel %vm1842, %v1410, %v1841
      %vm1844 = vcmp.eq.f32.partialorder %v1410, 0.0
      %v1845 = vand.u32 %v1410, 2147483648
      %v1846 = vsel %vm1844, %v1845, %v1843
      %v1847 = vrsqrt.pop %v1411
      %v1848 = vmul.f32 %v1411, %v1847
      %vm1849 = vcmp.eq.f32.partialorder %v1411, inf
      %v1850 = vsel %vm1849, %v1411, %v1848
      %vm1851 = vcmp.eq.f32.partialorder %v1411, 0.0
      %v1852 = vand.u32 %v1411, 2147483648
      %v1853 = vsel %vm1851, %v1852, %v1850
      %v1854 = vrsqrt.pop %v1412
      %v1855 = vmul.f32 %v1412, %v1854
      %vm1856 = vcmp.eq.f32.partialorder %v1412, inf
      %v1857 = vsel %vm1856, %v1412, %v1855
      %vm1858 = vcmp.eq.f32.partialorder %v1412, 0.0
      %v1859 = vand.u32 %v1412, 2147483648
      %v1860 = vsel %vm1858, %v1859, %v1857
      %v1861 = vsub.f32 1.0, %v1419
      %v1862 = vsub.f32 1.0, %v1426
      %v1863 = vsub.f32 1.0, %v1433
      %v1864 = vsub.f32 1.0, %v1440
      %v1865 = vsub.f32 1.0, %v1447
      %v1866 = vsub.f32 1.0, %v1454
      %v1867 = vsub.f32 1.0, %v1461
      %v1868 = vsub.f32 1.0, %v1468
      %v1869 = vsub.f32 1.0, %v1475
      %v1870 = vsub.f32 1.0, %v1482
      %v1871 = vsub.f32 1.0, %v1489
      %v1872 = vsub.f32 1.0, %v1496
      %v1873 = vsub.f32 1.0, %v1503
      %v1874 = vsub.f32 1.0, %v1510
      %v1875 = vsub.f32 1.0, %v1517
      %v1876 = vsub.f32 1.0, %v1524
      %v1877 = vsub.f32 1.0, %v1531
      %v1878 = vsub.f32 1.0, %v1538
      %v1879 = vsub.f32 1.0, %v1545
      %v1880 = vsub.f32 1.0, %v1552
      %v1881 = vsub.f32 1.0, %v1559
      %v1882 = vsub.f32 1.0, %v1566
      %v1883 = vsub.f32 1.0, %v1573
      %v1884 = vsub.f32 1.0, %v1580
      %v1885 = vsub.f32 1.0, %v1587
      %v1886 = vsub.f32 1.0, %v1594
      %v1887 = vsub.f32 1.0, %v1601
      %v1888 = vsub.f32 1.0, %v1608
      %v1889 = vsub.f32 1.0, %v1615
      %v1890 = vsub.f32 1.0, %v1622
      %v1891 = vsub.f32 1.0, %v1629
      %v1892 = vsub.f32 1.0, %v1636
      %v1893 = vsub.f32 1.0, %v1643
      %v1894 = vsub.f32 1.0, %v1650
      %v1895 = vsub.f32 1.0, %v1657
      %v1896 = vsub.f32 1.0, %v1664
      %v1897 = vsub.f32 1.0, %v1671
      %v1898 = vsub.f32 1.0, %v1678
      %v1899 = vsub.f32 1.0, %v1685
      %v1900 = vsub.f32 1.0, %v1692
      %v1901 = vsub.f32 1.0, %v1699
      %v1902 = vsub.f32 1.0, %v1706
      %v1903 = vsub.f32 1.0, %v1713
      %v1904 = vsub.f32 1.0, %v1720
      %v1905 = vsub.f32 1.0, %v1727
      %v1906 = vsub.f32 1.0, %v1734
      %v1907 = vsub.f32 1.0, %v1741
      %v1908 = vsub.f32 1.0, %v1748
      %v1909 = vsub.f32 1.0, %v1755
      %v1910 = vsub.f32 1.0, %v1762
      %v1911 = vsub.f32 1.0, %v1769
      %v1912 = vsub.f32 1.0, %v1776
      %v1913 = vsub.f32 1.0, %v1783
      %v1914 = vsub.f32 1.0, %v1790
      %v1915 = vsub.f32 1.0, %v1797
      %v1916 = vsub.f32 1.0, %v1804
      %v1917 = vsub.f32 1.0, %v1811
      %v1918 = vsub.f32 1.0, %v1818
      %v1919 = vsub.f32 1.0, %v1825
      %v1920 = vsub.f32 1.0, %v1832
      %v1921 = vsub.f32 1.0, %v1839
      %v1922 = vsub.f32 1.0, %v1846
      %v1923 = vsub.f32 1.0, %v1853
      %v1924 = vsub.f32 1.0, %v1860
      %v1925 = vmax.f32 %v1861, 0.0
      %v1926 = vmax.f32 %v1862, 0.0
      %v1927 = vmax.f32 %v1863, 0.0
      %v1928 = vmax.f32 %v1864, 0.0
      %v1929 = vmax.f32 %v1865, 0.0
      %v1930 = vmax.f32 %v1866, 0.0
      %v1931 = vmax.f32 %v1867, 0.0
      %v1932 = vmax.f32 %v1868, 0.0
      %v1933 = vmax.f32 %v1869, 0.0
      %v1934 = vmax.f32 %v1870, 0.0
      %v1935 = vmax.f32 %v1871, 0.0
      %v1936 = vmax.f32 %v1872, 0.0
      %v1937 = vmax.f32 %v1873, 0.0
      %v1938 = vmax.f32 %v1874, 0.0
      %v1939 = vmax.f32 %v1875, 0.0
      %v1940 = vmax.f32 %v1876, 0.0
      %v1941 = vmax.f32 %v1877, 0.0
      %v1942 = vmax.f32 %v1878, 0.0
      %v1943 = vmax.f32 %v1879, 0.0
      %v1944 = vmax.f32 %v1880, 0.0
      %v1945 = vmax.f32 %v1881, 0.0
      %v1946 = vmax.f32 %v1882, 0.0
      %v1947 = vmax.f32 %v1883, 0.0
      %v1948 = vmax.f32 %v1884, 0.0
      %v1949 = vmax.f32 %v1885, 0.0
      %v1950 = vmax.f32 %v1886, 0.0
      %v1951 = vmax.f32 %v1887, 0.0
      %v1952 = vmax.f32 %v1888, 0.0
      %v1953 = vmax.f32 %v1889, 0.0
      %v1954 = vmax.f32 %v1890, 0.0
      %v1955 = vmax.f32 %v1891, 0.0
      %v1956 = vmax.f32 %v1892, 0.0
      %v1957 = vmax.f32 %v1893, 0.0
      %v1958 = vmax.f32 %v1894, 0.0
      %v1959 = vmax.f32 %v1895, 0.0
      %v1960 = vmax.f32 %v1896, 0.0
      %v1961 = vmax.f32 %v1897, 0.0
      %v1962 = vmax.f32 %v1898, 0.0
      %v1963 = vmax.f32 %v1899, 0.0
      %v1964 = vmax.f32 %v1900, 0.0
      %v1965 = vmax.f32 %v1901, 0.0
      %v1966 = vmax.f32 %v1902, 0.0
      %v1967 = vmax.f32 %v1903, 0.0
      %v1968 = vmax.f32 %v1904, 0.0
      %v1969 = vmax.f32 %v1905, 0.0
      %v1970 = vmax.f32 %v1906, 0.0
      %v1971 = vmax.f32 %v1907, 0.0
      %v1972 = vmax.f32 %v1908, 0.0
      %v1973 = vmax.f32 %v1909, 0.0
      %v1974 = vmax.f32 %v1910, 0.0
      %v1975 = vmax.f32 %v1911, 0.0
      %v1976 = vmax.f32 %v1912, 0.0
      %v1977 = vmax.f32 %v1913, 0.0
      %v1978 = vmax.f32 %v1914, 0.0
      %v1979 = vmax.f32 %v1915, 0.0
      %v1980 = vmax.f32 %v1916, 0.0
      %v1981 = vmax.f32 %v1917, 0.0
      %v1982 = vmax.f32 %v1918, 0.0
      %v1983 = vmax.f32 %v1919, 0.0
      %v1984 = vmax.f32 %v1920, 0.0
      %v1985 = vmax.f32 %v1921, 0.0
      %v1986 = vmax.f32 %v1922, 0.0
      %v1987 = vmax.f32 %v1923, 0.0
      %v1988 = vmax.f32 %v1924, 0.0
      %v1989 = vsel %vm1221, %v1925, 0.0
      %v1990 = vsel %vm1222, %v1926, 0.0
      %v1991 = vsel %vm1223, %v1927, 0.0
      %v1992 = vsel %vm1224, %v1928, 0.0
      %v1993 = vsel %vm1225, %v1929, 0.0
      %v1994 = vsel %vm1226, %v1930, 0.0
      %v1995 = vsel %vm1227, %v1931, 0.0
      %v1996 = vsel %vm1228, %v1932, 0.0
      %v1997 = vsel %vm1229, %v1933, 0.0
      %v1998 = vsel %vm1230, %v1934, 0.0
      %v1999 = vsel %vm1231, %v1935, 0.0
      %v2000 = vsel %vm1232, %v1936, 0.0
      %v2001 = vsel %vm1233, %v1937, 0.0
      %v2002 = vsel %vm1234, %v1938, 0.0
      %v2003 = vsel %vm1235, %v1939, 0.0
      %v2004 = vsel %vm1236, %v1940, 0.0
      %v2005 = vsel %vm1237, %v1941, 0.0
      %v2006 = vsel %vm1238, %v1942, 0.0
      %v2007 = vsel %vm1239, %v1943, 0.0
      %v2008 = vsel %vm1240, %v1944, 0.0
      %v2009 = vsel %vm1241, %v1945, 0.0
      %v2010 = vsel %vm1242, %v1946, 0.0
      %v2011 = vsel %vm1243, %v1947, 0.0
      %v2012 = vsel %vm1244, %v1948, 0.0
      %v2013 = vsel %vm1245, %v1949, 0.0
      %v2014 = vsel %vm1246, %v1950, 0.0
      %v2015 = vsel %vm1247, %v1951, 0.0
      %v2016 = vsel %vm1248, %v1952, 0.0
      %v2017 = vsel %vm1249, %v1953, 0.0
      %v2018 = vsel %vm1250, %v1954, 0.0
      %v2019 = vsel %vm1251, %v1955, 0.0
      %v2020 = vsel %vm1252, %v1956, 0.0
      %v2021 = vsel %vm1253, %v1957, 0.0
      %v2022 = vsel %vm1254, %v1958, 0.0
      %v2023 = vsel %vm1255, %v1959, 0.0
      %v2024 = vsel %vm1256, %v1960, 0.0
      %v2025 = vsel %vm1257, %v1961, 0.0
      %v2026 = vsel %vm1258, %v1962, 0.0
      %v2027 = vsel %vm1259, %v1963, 0.0
      %v2028 = vsel %vm1260, %v1964, 0.0
      %v2029 = vsel %vm1261, %v1965, 0.0
      %v2030 = vsel %vm1262, %v1966, 0.0
      %v2031 = vsel %vm1263, %v1967, 0.0
      %v2032 = vsel %vm1264, %v1968, 0.0
      %v2033 = vsel %vm1265, %v1969, 0.0
      %v2034 = vsel %vm1266, %v1970, 0.0
      %v2035 = vsel %vm1267, %v1971, 0.0
      %v2036 = vsel %vm1268, %v1972, 0.0
      %v2037 = vsel %vm1269, %v1973, 0.0
      %v2038 = vsel %vm1270, %v1974, 0.0
      %v2039 = vsel %vm1271, %v1975, 0.0
      %v2040 = vsel %vm1272, %v1976, 0.0
      %v2041 = vsel %vm1273, %v1977, 0.0
      %v2042 = vsel %vm1274, %v1978, 0.0
      %v2043 = vsel %vm1275, %v1979, 0.0
      %v2044 = vsel %vm1276, %v1980, 0.0
      %v2045 = vsel %vm1277, %v1981, 0.0
      %v2046 = vsel %vm1278, %v1982, 0.0
      %v2047 = vsel %vm1279, %v1983, 0.0
      %v2048 = vsel %vm1280, %v1984, 0.0
      %v2049 = vsel %vm1281, %v1985, 0.0
      %v2050 = vsel %vm1282, %v1986, 0.0
      %v2051 = vsel %vm1283, %v1987, 0.0
      %v2052 = vsel %vm1284, %v1988, 0.0
      %v2053 = vadd.f32 %v1989, %v1990
      %v2054 = vadd.f32 %v2053, %v1991
      %v2055 = vadd.f32 %v2054, %v1992
      %v2056 = vadd.f32 %v2055, %v1993
      %v2057 = vadd.f32 %v2056, %v1994
      %v2058 = vadd.f32 %v2057, %v1995
      %v2059 = vadd.f32 %v2058, %v1996
      %v2060 = vadd.f32 %v2059, %v1997
      %v2061 = vadd.f32 %v2060, %v1998
      %v2062 = vadd.f32 %v2061, %v1999
      %v2063 = vadd.f32 %v2062, %v2000
      %v2064 = vadd.f32 %v2063, %v2001
      %v2065 = vadd.f32 %v2064, %v2002
      %v2066 = vadd.f32 %v2065, %v2003
      %v2067 = vadd.f32 %v2066, %v2004
      %v2068 = vadd.f32 %v2067, %v2005
      %v2069 = vadd.f32 %v2068, %v2006
      %v2070 = vadd.f32 %v2069, %v2007
      %v2071 = vadd.f32 %v2070, %v2008
      %v2072 = vadd.f32 %v2071, %v2009
      %v2073 = vadd.f32 %v2072, %v2010
      %v2074 = vadd.f32 %v2073, %v2011
      %v2075 = vadd.f32 %v2074, %v2012
      %v2076 = vadd.f32 %v2075, %v2013
      %v2077 = vadd.f32 %v2076, %v2014
      %v2078 = vadd.f32 %v2077, %v2015
      %v2079 = vadd.f32 %v2078, %v2016
      %v2080 = vadd.f32 %v2079, %v2017
      %v2081 = vadd.f32 %v2080, %v2018
      %v2082 = vadd.f32 %v2081, %v2019
      %v2083 = vadd.f32 %v2082, %v2020
      %v2084 = vadd.f32 %v2083, %v2021
      %v2085 = vadd.f32 %v2084, %v2022
      %v2086 = vadd.f32 %v2085, %v2023
      %v2087 = vadd.f32 %v2086, %v2024
      %v2088 = vadd.f32 %v2087, %v2025
      %v2089 = vadd.f32 %v2088, %v2026
      %v2090 = vadd.f32 %v2089, %v2027
      %v2091 = vadd.f32 %v2090, %v2028
      %v2092 = vadd.f32 %v2091, %v2029
      %v2093 = vadd.f32 %v2092, %v2030
      %v2094 = vadd.f32 %v2093, %v2031
      %v2095 = vadd.f32 %v2094, %v2032
      %v2096 = vadd.f32 %v2095, %v2033
      %v2097 = vadd.f32 %v2096, %v2034
      %v2098 = vadd.f32 %v2097, %v2035
      %v2099 = vadd.f32 %v2098, %v2036
      %v2100 = vadd.f32 %v2099, %v2037
      %v2101 = vadd.f32 %v2100, %v2038
      %v2102 = vadd.f32 %v2101, %v2039
      %v2103 = vadd.f32 %v2102, %v2040
      %v2104 = vadd.f32 %v2103, %v2041
      %v2105 = vadd.f32 %v2104, %v2042
      %v2106 = vadd.f32 %v2105, %v2043
      %v2107 = vadd.f32 %v2106, %v2044
      %v2108 = vadd.f32 %v2107, %v2045
      %v2109 = vadd.f32 %v2108, %v2046
      %v2110 = vadd.f32 %v2109, %v2047
      %v2111 = vadd.f32 %v2110, %v2048
      %v2112 = vadd.f32 %v2111, %v2049
      %v2113 = vadd.f32 %v2112, %v2050
      %v2114 = vadd.f32 %v2113, %v2051
      %v2115 = vadd.f32 %v2114, %v2052
      %2116 = vadd.xlane.f32.xlu0 %v2115
      %v2117 = vpop.xlane.xlu0 %2116
      %v2118 = vrot.slane %v2117, 4
      %v2119 = vadd.f32 %v2117, %v2118
      %v2120 = vrot.slane %v2119, 2
      %v2121 = vadd.f32 %v2119, %v2120
      %v2122 = vrot.slane %v2121, 1
      %v2123 = vadd.f32 %v2121, %v2122
      %s2124 = vtos %v2123
      %vm2125 = vcmp.eq.s32.totalorder %v879, 0
      %vm2126 = vcmp.eq.s32.totalorder %v946, 0
      %vm2127 = vmand %vm2125, %vm2126
      %v2128 = vstv %s1218
      %v2129 = vsel %vm2127, %v2128, 0.0
      %2130 = vst [vmem:[#allocation11] sm:$0xff] %v2129
      %v2131 = vstv %s2124
      %v2132 = vsel %vm2127, %v2131, 0.0
      %2133 = vst [vmem:[#allocation12] sm:$0xff] %v2132
    $region25: #{tpu_custom_call.1} parent=1 // pred_fallthru
      _
    // Predicated region
    $region26: #{tpu_custom_call.1} parent=1 // pred_check
      _
    $region27: #{tpu_custom_call.1} parent=1 // pred_check_branch
      %2135 = sbr.rel (0) target = $region29
    $region28: #{tpu_custom_call.1} parent=1 // pred_region
      %s2137 = ssub.s32 128, 128
      %2138 = vsyncadd [#allocation8], %s2137
      %s2140 = sshll.u32 [#allocation11], 4
      %s2141 = int_to_ptr.vmem [resolvable:$true] %s2140
      %2143 = dma.vmem_to_hbm [thread:$0]  %s2141, 128, %s4, [#allocation8]
    $region29: #{tpu_custom_call.1} parent=1 // pred_fallthru
      _
    // Predicated region
    $region30: #{tpu_custom_call.1} parent=1 // pred_check
      _
    $region31: #{tpu_custom_call.1} parent=1 // pred_check_branch
      %2145 = sbr.rel (0) target = $region33
    $region32: #{tpu_custom_call.1} parent=1 // pred_region
      %s2147 = ssub.s32 128, 128
      %2148 = vsyncadd [#allocation13], %s2147
      %s2150 = sshll.u32 [#allocation12], 4
      %s2151 = int_to_ptr.vmem [resolvable:$true] %s2150
      %2153 = dma.vmem_to_hbm [thread:$0]  %s2151, 128, %s5, [#allocation13]
    $region33: #{tpu_custom_call.1} parent=1 // pred_fallthru
      _
    // Predicated region
    $region34: #{tpu_custom_call.1} parent=1 // pred_check
      _
    $region35: #{tpu_custom_call.1} parent=1 // pred_check_branch
      %2155 = sbr.rel (0) target = $region37
    $region36: #{tpu_custom_call.1} parent=1 // pred_region
      %2156 = dma.done [#allocation8], 128
    $region37: #{tpu_custom_call.1} parent=1 // pred_fallthru
      _
    // Predicated region
    $region38: #{tpu_custom_call.1} parent=1 // pred_check
      _
    $region39: #{tpu_custom_call.1} parent=1 // pred_check_branch
      %2158 = sbr.rel (0) target = $region41
    $region40: #{tpu_custom_call.1} parent=1 // pred_region
      %2159 = dma.done [#allocation13], 128
    $region41: #{tpu_custom_call.1} parent=1 // pred_fallthru
      _
    %2160 = vsyncpa [#allocation7], 1
    %2161 = vsyncpa [#allocation10], 1
    %2162 = vsyncpa [#allocation8], 1
    %2163 = vsyncpa [#allocation13], 1

</llo_original>
